<compile_context>
chip_gen: v7x
topology: tpu7x:2x2x1
jax: 0.10.0
libtpu: 0.0.40
codegen_flags: <defaults>
</compile_context>

<pallas_src>
import math

import jax
import jax.numpy as jnp
import numpy as np
from jax.experimental import pallas as pl
from jax.experimental.pallas import tpu as pltpu

NEG_SLOPE = 0.01  # torch.nn.LeakyReLU default negative_slope


def _round_up(x, m):
    return ((x + m - 1) // m) * m


def _pos_encoder_kernel(x_ref, pe_ref, wlin_ref, bias0_ref, w1_ref, b1_ref,
                        w2_ref, rep_ref, o_ref):
    cd = w1_ref.dtype

    # Fused first linear + node-embedding broadcast:
    #   (tile_s, Cin) @ (Cin, N*Cout) + (1, N*Cout)
    h = jnp.dot(x_ref[...], wlin_ref[...], preferred_element_type=jnp.float32)
    h = h + bias0_ref[...]
    h = jnp.where(h >= 0.0, h, NEG_SLOPE * h)                 # LeakyReLU

    # MLP hidden layer: block-diagonal weight keeps the lane-dense layout.
    h = jnp.dot(h.astype(cd), w1_ref[...], preferred_element_type=jnp.float32)
    h = jnp.maximum(h + b1_ref[...], 0.0)                     # ReLU

    # MLP readout + fused (pe + b2) bias replicated across nodes on the MXU.
    out = jnp.dot(h.astype(cd), w2_ref[...], preferred_element_type=jnp.float32)
    out = out + jnp.dot(pe_ref[...], rep_ref[...],
                        preferred_element_type=jnp.float32)
    o_ref[...] = out.astype(o_ref.dtype)


def positional_encoder(x, params, pe_table, *, tile_s=None,
                       compute_dtype=jnp.float32):
    """x: [B, S, Cin] -> [B, S, N, Cout]."""
    B, S, Cin = x.shape
    N, Cout = params["node_emb"].shape
    NC = N * Cout
    assert NC % 128 == 0, "N * out_channels must be a multiple of 128 (lanes)"
    # TODO(synk): for very large N (block-diagonal (NC,NC) weights no longer
    # fitting VMEM) tile over the node axis instead of using block-diag weights.

    # Time tile: multiple of 8 sublanes, capped to keep VMEM comfortable even
    # on v7x's 64 MiB.  S is padded to a multiple of tile_s (padded rows are
    # computed on zeros and sliced off below).
    if tile_s is None:
        tile_s = min(_round_up(S, 8), 256)
    tile_s = _round_up(tile_s, 8)
    S_pad = _round_up(S, tile_s)
    if S_pad > pe_table.shape[0]:
        raise ValueError("sequence longer than positional-encoding table")
    if S_pad != S:
        x = jnp.pad(x, ((0, 0), (0, S_pad - S), (0, 0)))

    cd = compute_dtype
    eye_n = jnp.eye(N, dtype=jnp.float32)

    # Fold node broadcast / biases / pe replication into MXU-friendly operands
    # (small arrays, built once per call outside the kernel).
    w_lin_rep = jnp.tile(params["w_lin"], (1, N)).astype(cd)          # (Cin, NC)
    bias0 = (jnp.tile(params["b_lin"], (1, N))
             + params["node_emb"].reshape(1, NC)).astype(jnp.float32)  # (1, NC)
    w1_bd = jnp.kron(eye_n, params["w1"]).astype(cd)                  # (NC, NC)
    b1_rep = jnp.tile(params["b1"], (1, N)).astype(jnp.float32)       # (1, NC)
    w2_bd = jnp.kron(eye_n, params["w2"]).astype(cd)                  # (NC, NC)
    rep = jnp.tile(jnp.eye(Cout, dtype=jnp.float32), (1, N)).astype(cd)  # (Cout, NC)
    pe_b2 = (pe_table[:S_pad] + params["b2"]).astype(cd)              # (S_pad, Cout)
    x_c = x.astype(cd)

    grid = (B, S_pad // tile_s)
    isz = jnp.dtype(cd).itemsize
    cost = pl.CostEstimate(
        flops=2 * B * S_pad * NC * (Cin + 2 * NC + Cout),
        transcendentals=0,
        bytes_accessed=(4 * B * S_pad * NC                      # f32 output
                        + isz * B * S_pad * (Cin + Cout)        # x + pe tiles
                        + isz * (2 * NC * NC + (Cin + Cout + 3) * NC)))

    out = pl.pallas_call(
        _pos_encoder_kernel,
        out_shape=jax.ShapeDtypeStruct((B, S_pad, NC), jnp.float32),
        grid_spec=pltpu.PrefetchScalarGridSpec(
            num_scalar_prefetch=0,
            grid=grid,
            in_specs=[
                pl.BlockSpec((None, tile_s, Cin), lambda b, s: (b, s, 0)),  # x
                pl.BlockSpec((tile_s, Cout), lambda b, s: (s, 0)),          # pe + b2
                pl.BlockSpec((Cin, NC), lambda b, s: (0, 0)),               # tiled W_lin
                pl.BlockSpec((1, NC), lambda b, s: (0, 0)),                 # b_lin + emb
                pl.BlockSpec((NC, NC), lambda b, s: (0, 0)),                # blockdiag W1
                pl.BlockSpec((1, NC), lambda b, s: (0, 0)),                 # tiled b1
                pl.BlockSpec((NC, NC), lambda b, s: (0, 0)),                # blockdiag W2
                pl.BlockSpec((Cout, NC), lambda b, s: (0, 0)),              # replication mat
            ],
            out_specs=pl.BlockSpec((None, tile_s, NC), lambda b, s: (b, s, 0)),
        ),
        compiler_params=pltpu.CompilerParams(
            dimension_semantics=("parallel", "parallel")),
        cost_estimate=cost,
    )(x_c, pe_b2, w_lin_rep, bias0, w1_bd, b1_rep, w2_bd, rep)

    return out[:, :S, :].reshape(B, S, N, Cout)


def make_pe_table(max_len, d_model):
    # Vaswani et al. 2017 sinusoidal table (same as the torch module's buffer)
    position = jnp.arange(max_len, dtype=jnp.float32)[:, None]
    div_term = jnp.exp(jnp.arange(0, d_model, 2, dtype=jnp.float32)
                       * (-math.log(10000.0) / d_model))
    pe = jnp.zeros((max_len, d_model), dtype=jnp.float32)
    pe = pe.at[:, 0::2].set(jnp.sin(position * div_term))
    pe = pe.at[:, 1::2].set(jnp.cos(position * div_term))
    return pe


def init_params(key, Cin, Cout, N):
    ks = jax.random.split(key, 7)

    def lin_init(kw, kb, fan_in, fan_out):
        bound = 1.0 / math.sqrt(fan_in)
        w = jax.random.uniform(kw, (fan_in, fan_out), jnp.float32, -bound, bound)
        b = jax.random.uniform(kb, (1, fan_out), jnp.float32, -bound, bound)
        return w, b

    w_lin, b_lin = lin_init(ks[0], ks[1], Cin, Cout)
    w1, b1 = lin_init(ks[2], ks[3], Cout, Cout)
    w2, b2 = lin_init(ks[4], ks[5], Cout, Cout)
    node_emb = jax.random.normal(ks[6], (N, Cout), jnp.float32)
    return dict(w_lin=w_lin, b_lin=b_lin, w1=w1, b1=b1, w2=w2, b2=b2,
                node_emb=node_emb)


def reference(x, params, pe_table):
    # pure-JAX reference mirroring the PyTorch forward exactly
    lin = x @ params["w_lin"] + params["b_lin"][0]
    h = lin[:, :, None, :] + params["node_emb"][None, None, :, :]
    h = jnp.where(h >= 0.0, h, NEG_SLOPE * h)
    h = jnp.maximum(h @ params["w1"] + params["b1"][0], 0.0)
    out = h @ params["w2"] + params["b2"][0]
    S = x.shape[1]
    out = out + pe_table[:S][None, :, None, :]
    return out


if __name__ == "__main__":
    B, S, N, Cin, Cout = 2, 8, 16, 4, 32
    key = jax.random.PRNGKey(0)
    kx, kp = jax.random.split(key)
    x = jax.random.normal(kx, (B, S, Cin), jnp.float32)
    params = init_params(kp, Cin, Cout, N)
    pe_table = make_pe_table(5000, Cout)

    out = positional_encoder(x, params, pe_table)
    out = jax.block_until_ready(out)

    ref = reference(x, params, pe_table)
    np.testing.assert_allclose(np.asarray(out), np.asarray(ref),
                               rtol=1e-5, atol=1e-5)
    print("KERNEL_OK")
</pallas_src>

<mosaic_0001>
module attributes {stable_mosaic.version = 11 : i64} {
  func.func @_pos_encoder_kernel(%arg0: i32, %arg1: i32, %arg2: memref<1x8x4xf32, #tpu.memory_space<vmem>>, %arg3: memref<8x32xf32, #tpu.memory_space<vmem>>, %arg4: memref<4x512xf32, #tpu.memory_space<vmem>>, %arg5: memref<1x512xf32, #tpu.memory_space<vmem>>, %arg6: memref<512x512xf32, #tpu.memory_space<vmem>>, %arg7: memref<1x512xf32, #tpu.memory_space<vmem>>, %arg8: memref<512x512xf32, #tpu.memory_space<vmem>>, %arg9: memref<32x512xf32, #tpu.memory_space<vmem>>, %arg10: memref<1x8x512xf32, #tpu.memory_space<vmem>>) attributes {dimension_semantics = [#tpu.dimension_semantics<parallel>, #tpu.dimension_semantics<parallel>], iteration_bounds = array<i64: 2, 1>, scalar_prefetch = 0 : i64, scratch_operands = 0 : i64, tpu.core_type = #tpu.core_type<tc>, window_params = [{transform_indices = @transform_0, window_bounds = array<i64: 1, 8, 4>}, {transform_indices = @transform_1, window_bounds = array<i64: 8, 32>}, {pipeline_mode = #tpu.pipeline_mode<synchronous>, transform_indices = @transform_2, window_bounds = array<i64: 4, 512>}, {pipeline_mode = #tpu.pipeline_mode<synchronous>, transform_indices = @transform_3, window_bounds = array<i64: 1, 512>}, {pipeline_mode = #tpu.pipeline_mode<synchronous>, transform_indices = @transform_4, window_bounds = array<i64: 512, 512>}, {pipeline_mode = #tpu.pipeline_mode<synchronous>, transform_indices = @transform_5, window_bounds = array<i64: 1, 512>}, {pipeline_mode = #tpu.pipeline_mode<synchronous>, transform_indices = @transform_6, window_bounds = array<i64: 512, 512>}, {pipeline_mode = #tpu.pipeline_mode<synchronous>, transform_indices = @transform_7, window_bounds = array<i64: 32, 512>}, {transform_indices = @transform_8, window_bounds = array<i64: 1, 8, 512>}]} {
    %c0 = arith.constant 0 : index
    %c0_0 = arith.constant 0 : index
    %c0_1 = arith.constant 0 : index
    %0 = vector.load %arg2[%c0, %c0_0, %c0_1] : memref<1x8x4xf32, #tpu.memory_space<vmem>>, vector<1x8x4xf32>
    %1 = vector.shape_cast %0 : vector<1x8x4xf32> to vector<8x4xf32>
    %c0_2 = arith.constant 0 : index
    %c0_3 = arith.constant 0 : index
    %2 = vector.load %arg4[%c0_2, %c0_3] : memref<4x512xf32, #tpu.memory_space<vmem>>, vector<4x512xf32>
    %cst = arith.constant dense<0.000000e+00> : vector<8x512xf32>
    %3 = tpu.matmul %1, %2, %cst {dimension_numbers = #tpu.dot_dimension_numbers<[1], [0], [0], [1], [0, 0, 1, 1], [], []>} : vector<8x4xf32>, vector<4x512xf32>, vector<8x512xf32> -> vector<8x512xf32>
    %c0_4 = arith.constant 0 : index
    %c0_5 = arith.constant 0 : index
    %4 = vector.load %arg5[%c0_4, %c0_5] : memref<1x512xf32, #tpu.memory_space<vmem>>, vector<1x512xf32>
    %5 = vector.broadcast %4 : vector<1x512xf32> to vector<8x512xf32>
    %6 = arith.addf %3, %5 : vector<8x512xf32>
    %cst_6 = arith.constant 0.000000e+00 : f32
    %7 = vector.broadcast %cst_6 : f32 to vector<8x512xf32>
    %8 = arith.cmpf oge, %6, %7 : vector<8x512xf32>
    %cst_7 = arith.constant 0.00999999977 : f32
    %9 = vector.broadcast %cst_7 : f32 to vector<8x512xf32>
    %10 = arith.mulf %9, %6 : vector<8x512xf32>
    %11 = arith.select %8, %6, %10 : vector<8x512xi1>, vector<8x512xf32>
    %c0_8 = arith.constant 0 : index
    %c0_9 = arith.constant 0 : index
    %12 = vector.load %arg6[%c0_8, %c0_9] : memref<512x512xf32, #tpu.memory_space<vmem>>, vector<512x512xf32>
    %cst_10 = arith.constant dense<0.000000e+00> : vector<8x512xf32>
    %13 = tpu.matmul %11, %12, %cst_10 {dimension_numbers = #tpu.dot_dimension_numbers<[1], [0], [0], [1], [0, 0, 1, 1], [], []>} : vector<8x512xf32>, vector<512x512xf32>, vector<8x512xf32> -> vector<8x512xf32>
    %c0_11 = arith.constant 0 : index
    %c0_12 = arith.constant 0 : index
    %14 = vector.load %arg7[%c0_11, %c0_12] : memref<1x512xf32, #tpu.memory_space<vmem>>, vector<1x512xf32>
    %15 = vector.broadcast %14 : vector<1x512xf32> to vector<8x512xf32>
    %16 = arith.addf %13, %15 : vector<8x512xf32>
    %cst_13 = arith.constant 0.000000e+00 : f32
    %17 = vector.broadcast %cst_13 : f32 to vector<8x512xf32>
    %18 = arith.maximumf %16, %17 : vector<8x512xf32>
    %c0_14 = arith.constant 0 : index
    %c0_15 = arith.constant 0 : index
    %19 = vector.load %arg8[%c0_14, %c0_15] : memref<512x512xf32, #tpu.memory_space<vmem>>, vector<512x512xf32>
    %cst_16 = arith.constant dense<0.000000e+00> : vector<8x512xf32>
    %20 = tpu.matmul %18, %19, %cst_16 {dimension_numbers = #tpu.dot_dimension_numbers<[1], [0], [0], [1], [0, 0, 1, 1], [], []>} : vector<8x512xf32>, vector<512x512xf32>, vector<8x512xf32> -> vector<8x512xf32>
    %c0_17 = arith.constant 0 : index
    %c0_18 = arith.constant 0 : index
    %21 = vector.load %arg3[%c0_17, %c0_18] : memref<8x32xf32, #tpu.memory_space<vmem>>, vector<8x32xf32>
    %c0_19 = arith.constant 0 : index
    %c0_20 = arith.constant 0 : index
    %22 = vector.load %arg9[%c0_19, %c0_20] : memref<32x512xf32, #tpu.memory_space<vmem>>, vector<32x512xf32>
    %cst_21 = arith.constant dense<0.000000e+00> : vector<8x512xf32>
    %23 = tpu.matmul %21, %22, %cst_21 {dimension_numbers = #tpu.dot_dimension_numbers<[1], [0], [0], [1], [0, 0, 1, 1], [], []>} : vector<8x32xf32>, vector<32x512xf32>, vector<8x512xf32> -> vector<8x512xf32>
    %24 = arith.addf %20, %23 : vector<8x512xf32>
    %c0_22 = arith.constant 0 : index
    %c0_23 = arith.constant 0 : index
    %c0_24 = arith.constant 0 : index
    %25 = vector.load %arg10[%c0_22, %c0_23, %c0_24] : memref<1x8x512xf32, #tpu.memory_space<vmem>>, vector<1x8x512xf32>
    %26 = vector.shape_cast %25 : vector<1x8x512xf32> to vector<8x512xf32>
    %27 = vector.shape_cast %24 : vector<8x512xf32> to vector<1x8x512xf32>
    tpu.vector_store %arg10[%c0_22, %c0_23, %c0_24], %27 {strides = array<i32>} : memref<1x8x512xf32, #tpu.memory_space<vmem>>, vector<1x8x512xf32>,
    return
  }
  func.func @transform_0(%arg0: i32, %arg1: i32) -> (i32, i32, i32) {
    %c0_i32 = arith.constant 0 : i32
    %c0_i32_0 = arith.constant 0 : i32
    return %arg0, %arg1, %c0_i32 : i32, i32, i32
  }
  func.func @transform_1(%arg0: i32, %arg1: i32) -> (i32, i32) {
    %c0_i32 = arith.constant 0 : i32
    %c0_i32_0 = arith.constant 0 : i32
    return %arg1, %c0_i32 : i32, i32
  }
  func.func @transform_2(%arg0: i32, %arg1: i32) -> (i32, i32) {
    %c0_i32 = arith.constant 0 : i32
    %c0_i32_0 = arith.constant 0 : i32
    %c0_i32_1 = arith.constant 0 : i32
    return %c0_i32, %c0_i32_0 : i32, i32
  }
  func.func @transform_3(%arg0: i32, %arg1: i32) -> (i32, i32) {
    %c0_i32 = arith.constant 0 : i32
    %c0_i32_0 = arith.constant 0 : i32
    %c0_i32_1 = arith.constant 0 : i32
    return %c0_i32, %c0_i32_0 : i32, i32
  }
  func.func @transform_4(%arg0: i32, %arg1: i32) -> (i32, i32) {
    %c0_i32 = arith.constant 0 : i32
    %c0_i32_0 = arith.constant 0 : i32
    %c0_i32_1 = arith.constant 0 : i32
    return %c0_i32, %c0_i32_0 : i32, i32
  }
  func.func @transform_5(%arg0: i32, %arg1: i32) -> (i32, i32) {
    %c0_i32 = arith.constant 0 : i32
    %c0_i32_0 = arith.constant 0 : i32
    %c0_i32_1 = arith.constant 0 : i32
    return %c0_i32, %c0_i32_0 : i32, i32
  }
  func.func @transform_6(%arg0: i32, %arg1: i32) -> (i32, i32) {
    %c0_i32 = arith.constant 0 : i32
    %c0_i32_0 = arith.constant 0 : i32
    %c0_i32_1 = arith.constant 0 : i32
    return %c0_i32, %c0_i32_0 : i32, i32
  }
  func.func @transform_7(%arg0: i32, %arg1: i32) -> (i32, i32) {
    %c0_i32 = arith.constant 0 : i32
    %c0_i32_0 = arith.constant 0 : i32
    %c0_i32_1 = arith.constant 0 : i32
    return %c0_i32, %c0_i32_0 : i32, i32
  }
  func.func @transform_8(%arg0: i32, %arg1: i32) -> (i32, i32, i32) {
    %c0_i32 = arith.constant 0 : i32
    %c0_i32_0 = arith.constant 0 : i32
    return %arg0, %arg1, %c0_i32 : i32, i32, i32
  }
}

</mosaic_0001>

<llo_original>
// kernel: tpu_custom_call.1
$region0: #{tpu_custom_call.1}
  #allocation0 [shape = 'u32[]', space=smem, size = 0x4, offset = 0x4, fixed_abs, tag = 'smem constant byte address 0x4 - core index']
  #allocation1 [shape = 'u32[144,128]{1,0:T(1,128)}', space=vmem, size = 0x12000, scoped, tag = 'internal scratch']
  %s0 = inlined_call_operand.vmem [shape: f32[2,8,4], index: 0, kind: input, shape index: {}]
  %s1 = inlined_call_operand.vmem [shape: f32[8,32], index: 1, kind: input, shape index: {}]
  %s2 = inlined_call_operand.vmem [shape: f32[4,512], index: 2, kind: input, shape index: {}]
  %s3 = inlined_call_operand.vmem [shape: f32[1,512], index: 3, kind: input, shape index: {}]
  %s4 = inlined_call_operand.hbm [shape: f32[512,512], index: 4, kind: input, shape index: {}]
  %s5 = inlined_call_operand.vmem [shape: f32[1,512], index: 5, kind: input, shape index: {}]
  %s6 = inlined_call_operand.hbm [shape: f32[512,512], index: 6, kind: input, shape index: {}]
  %s7 = inlined_call_operand.hbm [shape: f32[32,512], index: 7, kind: input, shape index: {}]
  %s8 = inlined_call_operand.hbm [shape: f32[2,8,512], index: 8, kind: output, shape index: {}]
  %s9 = sld [smem:[#allocation0]]
  $region77: #{tpu_custom_call.1} parent=0
    _
  %s11 = ssub.s32 1, %s9
  %s12 = scalar_select 0, %s11, %s9
  $region1: #{tpu_custom_call.1} parent=0
    #allocation2 [shape = 'u8[1048576]{0}', space=vmem, size = 0x100000, scoped, tag = 'input window, operand 4, single buffered']
    #allocation3 [shape = 's32[2]{0}', space=sflag, size = 0x8, scoped, tag = 'scoped memory for tpu_custom_call.1']
    #allocation4 [shape = 's32[2]{0}', space=sflag, size = 0x8, scoped, tag = 'scoped memory for tpu_custom_call.1']
    #allocation5 [shape = 'u8[1048576]{0}', space=vmem, size = 0x100000, scoped, tag = 'input window, operand 6, single buffered']
    #allocation6 [shape = 's32[1]{0}', space=sflag, size = 0x4, scoped, tag = 'scoped memory for tpu_custom_call.1']
    #allocation7 [shape = 'u8[65536]{0}', space=vmem, size = 0x10000, scoped, tag = 'input window, operand 7, single buffered']
    #allocation8 [shape = 'u8[32768]{0}', space=vmem, size = 0x8000, scoped, tag = 'output window, operand 0']
    %13 = vsyncpa [#allocation3], 0
    %14 = vsyncpa [#allocation6], 0
    %15 = vsyncpa [#allocation4], 0
    %s16 = scalar_lea.sflag [#allocation4], 1
    %17 = vsyncpa %s16, 0
    loop: start=0, step=1, limit=4
    $region2: #{tpu_custom_call.1} parent=1 // loop_pre_header
      _
    $region3: #{tpu_custom_call.1} parent=1 // loop_header
      %s19 = sphi 0, %s23
      %p20 = scmp.ge.s32.totalorder %s19, 4
      %s26 = sphi 0, %s38
      %s27 = sphi 0, %s34
      %s28 = sphi 0, %s26
      %s29 = sphi 0, %s27
      %s30 = sphi 0, %s28
      %s31 = sphi 0, %s29
      %s43 = sphi 0, %s45
      %s46 = sphi 0, %s43
      %s47 = sphi 0, %s46
      %s63 = sphi 0, %s47
      %s69 = sphi 0, %s71
      %s72 = sphi 0, %s69
      %s73 = sphi 0, %s72
      %s89 = sphi 0, %s73
      %s93 = sphi 0, %s93
      %s95 = sphi 0, %s93
      %s96 = sphi 0, %s95
      %s110 = sphi 0, %s96
      %s114 = sphi 0, %s114
      %s116 = sphi 0, %s114
      %s117 = sphi 0, %s116
      %s131 = sphi 0, %s117
      %s135 = sphi 0, %s135
      %s137 = sphi 0, %s135
      %s138 = sphi 0, %s137
      %s152 = sphi 0, %s138
      %s156 = sphi 0, %s156
      %s158 = sphi 0, %s156
      %s159 = sphi 0, %s158
      %s173 = sphi 0, %s159
      %s177 = sphi 0, %s177
      %s179 = sphi 0, %s177
      %s180 = sphi 0, %s179
      %s194 = sphi 0, %s180
      %s198 = sphi 0, %s198
      %s200 = sphi 0, %s198
      %s201 = sphi 0, %s200
      %s215 = sphi 0, %s201
      %s223 = sphi 0, %s225
      %s226 = sphi 0, %s223
      %s227 = sphi 0, %s226
      %s243 = sphi 0, %s227
    $region4: #{tpu_custom_call.1} parent=1 // loop_header_branch
      %22 = sbr.rel (%p20) target = $region8
    $region5: #{tpu_custom_call.1} parent=1 // loop_body
      %s24 = ssub.s32 %s19, 1
      %s25 = ssub.s32 %s19, 2
      %s32 = sadd.s32 1, %s27
      %p33 = scmp.ge.s32.totalorder %s32, 1
      %s34 = scalar_select %p33, 0, %s32
      %s35 = sadd.s32 1, %s26
      %s36 = scalar_select %p33, %s35, %s26
      %p37 = scmp.ge.s32.totalorder %s36, 2
      %s38 = scalar_select %p37, 0, %s36
      %s39 = ssub.s32 %s26, %s38
      %s40 = ssub.s32 %s27, %s34
      %s41 = sor.u32 %s39, %s40
      %p42 = scmp.eq.s32.totalorder %s41, 0
      %s44 = sadd.s32 %s43, 1
      %s45 = scalar_select %p42, %s43, %s44
      %p48 = pneg %p42
      %p49 = scmp.eq.s32.totalorder %s19, 1
      %p50 = por %p48, %p49
      %p51 = scmp.ne.s32.totalorder %s43, %s46
      %p52 = scmp.eq.s32.totalorder %s19, 0
      %p53 = por %p51, %p52
      %p54 = scmp.ne.s32.totalorder %s43, %s46
      %p55 = scmp.eq.s32.totalorder %s24, 1
      %p56 = por %p54, %p55
      %p57 = scmp.ne.s32.totalorder %s46, %s47
      %p58 = scmp.eq.s32.totalorder %s24, 0
      %p59 = por %p57, %p58
      %p60 = scmp.ne.s32.totalorder %s46, %s47
      %p61 = scmp.eq.s32.totalorder %s25, 1
      %p62 = por %p60, %p61
      %p64 = scmp.ne.s32.totalorder %s47, %s63
      %p65 = scmp.eq.s32.totalorder %s25, 0
      %p66 = por %p64, %p65
      %s67 = ssub.s32 %s27, %s34
      %p68 = scmp.eq.s32.totalorder %s67, 0
      %s70 = sadd.s32 %s69, 1
      %s71 = scalar_select %p68, %s69, %s70
      %p74 = pneg %p68
      %p75 = scmp.eq.s32.totalorder %s19, 1
      %p76 = por %p74, %p75
      %p77 = scmp.ne.s32.totalorder %s69, %s72
      %p78 = scmp.eq.s32.totalorder %s19, 0
      %p79 = por %p77, %p78
      %p80 = scmp.ne.s32.totalorder %s69, %s72
      %p81 = scmp.eq.s32.totalorder %s24, 1
      %p82 = por %p80, %p81
      %p83 = scmp.ne.s32.totalorder %s72, %s73
      %p84 = scmp.eq.s32.totalorder %s24, 0
      %p85 = por %p83, %p84
      %p86 = scmp.ne.s32.totalorder %s72, %s73
      %p87 = scmp.eq.s32.totalorder %s25, 1
      %p88 = por %p86, %p87
      %p90 = scmp.ne.s32.totalorder %s73, %s89
      %p91 = scmp.eq.s32.totalorder %s25, 0
      %p92 = por %p90, %p91
      %s94 = sadd.s32 %s93, 1
      %p97 = scmp.eq.s32.totalorder %s19, 1
      %p98 = scmp.ne.s32.totalorder %s93, %s95
      %p99 = scmp.eq.s32.totalorder %s19, 0
      %p100 = por %p98, %p99
      %p101 = scmp.ne.s32.totalorder %s93, %s95
      %p102 = scmp.eq.s32.totalorder %s24, 1
      %p103 = por %p101, %p102
      %p104 = scmp.ne.s32.totalorder %s95, %s96
      %p105 = scmp.eq.s32.totalorder %s24, 0
      %p106 = por %p104, %p105
      %p107 = scmp.ne.s32.totalorder %s95, %s96
      %p108 = scmp.eq.s32.totalorder %s25, 1
      %p109 = por %p107, %p108
      %p111 = scmp.ne.s32.totalorder %s96, %s110
      %p112 = scmp.eq.s32.totalorder %s25, 0
      %p113 = por %p111, %p112
      %s115 = sadd.s32 %s114, 1
      %p118 = scmp.eq.s32.totalorder %s19, 1
      %p119 = scmp.ne.s32.totalorder %s114, %s116
      %p120 = scmp.eq.s32.totalorder %s19, 0
      %p121 = por %p119, %p120
      %p122 = scmp.ne.s32.totalorder %s114, %s116
      %p123 = scmp.eq.s32.totalorder %s24, 1
      %p124 = por %p122, %p123
      %p125 = scmp.ne.s32.totalorder %s116, %s117
      %p126 = scmp.eq.s32.totalorder %s24, 0
      %p127 = por %p125, %p126
      %p128 = scmp.ne.s32.totalorder %s116, %s117
      %p129 = scmp.eq.s32.totalorder %s25, 1
      %p130 = por %p128, %p129
      %p132 = scmp.ne.s32.totalorder %s117, %s131
      %p133 = scmp.eq.s32.totalorder %s25, 0
      %p134 = por %p132, %p133
      %s136 = sadd.s32 %s135, 1
      %p139 = scmp.eq.s32.totalorder %s19, 1
      %p140 = scmp.ne.s32.totalorder %s135, %s137
      %p141 = scmp.eq.s32.totalorder %s19, 0
      %p142 = por %p140, %p141
      %p143 = scmp.ne.s32.totalorder %s135, %s137
      %p144 = scmp.eq.s32.totalorder %s24, 1
      %p145 = por %p143, %p144
      %p146 = scmp.ne.s32.totalorder %s137, %s138
      %p147 = scmp.eq.s32.totalorder %s24, 0
      %p148 = por %p146, %p147
      %p149 = scmp.ne.s32.totalorder %s137, %s138
      %p150 = scmp.eq.s32.totalorder %s25, 1
      %p151 = por %p149, %p150
      %p153 = scmp.ne.s32.totalorder %s138, %s152
      %p154 = scmp.eq.s32.totalorder %s25, 0
      %p155 = por %p153, %p154
      %s157 = sadd.s32 %s156, 1
      %p160 = scmp.eq.s32.totalorder %s19, 1
      %p161 = scmp.ne.s32.totalorder %s156, %s158
      %p162 = scmp.eq.s32.totalorder %s19, 0
      %p163 = por %p161, %p162
      %p164 = scmp.ne.s32.totalorder %s156, %s158
      %p165 = scmp.eq.s32.totalorder %s24, 1
      %p166 = por %p164, %p165
      %p167 = scmp.ne.s32.totalorder %s158, %s159
      %p168 = scmp.eq.s32.totalorder %s24, 0
      %p169 = por %p167, %p168
      %p170 = scmp.ne.s32.totalorder %s158, %s159
      %p171 = scmp.eq.s32.totalorder %s25, 1
      %p172 = por %p170, %p171
      %p174 = scmp.ne.s32.totalorder %s159, %s173
      %p175 = scmp.eq.s32.totalorder %s25, 0
      %p176 = por %p174, %p175
      %s178 = sadd.s32 %s177, 1
      %p181 = scmp.eq.s32.totalorder %s19, 1
      %p182 = scmp.ne.s32.totalorder %s177, %s179
      %p183 = scmp.eq.s32.totalorder %s19, 0
      %p184 = por %p182, %p183
      %p185 = scmp.ne.s32.totalorder %s177, %s179
      %p186 = scmp.eq.s32.totalorder %s24, 1
      %p187 = por %p185, %p186
      %p188 = scmp.ne.s32.totalorder %s179, %s180
      %p189 = scmp.eq.s32.totalorder %s24, 0
      %p190 = por %p188, %p189
      %p191 = scmp.ne.s32.totalorder %s179, %s180
      %p192 = scmp.eq.s32.totalorder %s25, 1
      %p193 = por %p191, %p192
      %p195 = scmp.ne.s32.totalorder %s180, %s194
      %p196 = scmp.eq.s32.totalorder %s25, 0
      %p197 = por %p195, %p196
      %s199 = sadd.s32 %s198, 1
      %p202 = scmp.eq.s32.totalorder %s19, 1
      %p203 = scmp.ne.s32.totalorder %s198, %s200
      %p204 = scmp.eq.s32.totalorder %s19, 0
      %p205 = por %p203, %p204
      %p206 = scmp.ne.s32.totalorder %s198, %s200
      %p207 = scmp.eq.s32.totalorder %s24, 1
      %p208 = por %p206, %p207
      %p209 = scmp.ne.s32.totalorder %s200, %s201
      %p210 = scmp.eq.s32.totalorder %s24, 0
      %p211 = por %p209, %p210
      %p212 = scmp.ne.s32.totalorder %s200, %s201
      %p213 = scmp.eq.s32.totalorder %s25, 1
      %p214 = por %p212, %p213
      %p216 = scmp.ne.s32.totalorder %s201, %s215
      %p217 = scmp.eq.s32.totalorder %s25, 0
      %p218 = por %p216, %p217
      %s219 = ssub.s32 %s26, %s38
      %s220 = ssub.s32 %s27, %s34
      %s221 = sor.u32 %s219, %s220
      %p222 = scmp.eq.s32.totalorder %s221, 0
      %s224 = sadd.s32 %s223, 1
      %s225 = scalar_select %p222, %s223, %s224
      %p228 = pneg %p222
      %p229 = scmp.eq.s32.totalorder %s19, 1
      %p230 = por %p228, %p229
      %p231 = scmp.ne.s32.totalorder %s223, %s226
      %p232 = scmp.eq.s32.totalorder %s19, 0
      %p233 = por %p231, %p232
      %p234 = scmp.ne.s32.totalorder %s223, %s226
      %p235 = scmp.eq.s32.totalorder %s24, 1
      %p236 = por %p234, %p235
      %p237 = scmp.ne.s32.totalorder %s226, %s227
      %p238 = scmp.eq.s32.totalorder %s24, 0
      %p239 = por %p237, %p238
      %p240 = scmp.ne.s32.totalorder %s226, %s227
      %p241 = scmp.eq.s32.totalorder %s25, 1
      %p242 = por %p240, %p241
      %p244 = scmp.ne.s32.totalorder %s227, %s243
      %p245 = scmp.eq.s32.totalorder %s25, 0
      %p246 = por %p244, %p245
      %p247 = scmp.le.s32.totalorder 1, %s19
      %p248 = scmp.lt.s32.totalorder %s19, 3
      %p249 = pnand %p247, %p248
      %p250 = pneg %p249
      // Predicated region
      $region9: #{tpu_custom_call.1} parent=5 // pred_check
        _
      $region10: #{tpu_custom_call.1} parent=5 // pred_check_branch
        %252 = sbr.rel (%p249) target = $region12
      $region11: #{tpu_custom_call.1} parent=5 // pred_region
        %s253 = ssub.s32 %s19, 1
        // Predicated region
        $region13: #{tpu_custom_call.1} parent=11 // pred_check
          %p254 = pneg %p85
        $region14: #{tpu_custom_call.1} parent=11 // pred_check_branch
          %256 = sbr.rel (%p254) target = $region16
        $region15: #{tpu_custom_call.1} parent=11 // pred_region
          %p257 = scmp.lt.s32.totalorder %s29, 0
          %s258 = scalar_select %p257, %s29, 0
          %s259 = smul.addr %s258, 8
          %s260 = scalar_lea.vmem %s1, %s259
        $region16: #{tpu_custom_call.1} parent=11 // pred_fallthru
          _
        // Predicated region
        $region17: #{tpu_custom_call.1} parent=11 // pred_check
          %p261 = pneg %p106
        $region18: #{tpu_custom_call.1} parent=11 // pred_check_branch
          %263 = sbr.rel (%p261) target = $region20
        $region19: #{tpu_custom_call.1} parent=11 // pred_region
          _
        $region20: #{tpu_custom_call.1} parent=11 // pred_fallthru
          _
        // Predicated region
        $region21: #{tpu_custom_call.1} parent=11 // pred_check
          %p264 = pneg %p127
        $region22: #{tpu_custom_call.1} parent=11 // pred_check_branch
          %266 = sbr.rel (%p264) target = $region24
        $region23: #{tpu_custom_call.1} parent=11 // pred_region
          _
        $region24: #{tpu_custom_call.1} parent=11 // pred_fallthru
          _
        // Predicated region
        $region25: #{tpu_custom_call.1} parent=11 // pred_check
          %p267 = pneg %p148
        $region26: #{tpu_custom_call.1} parent=11 // pred_check_branch
          %269 = sbr.rel (%p267) target = $region28
        $region27: #{tpu_custom_call.1} parent=11 // pred_region
          %s271 = ssub.s32 32768, 32768
          %272 = vsyncadd [#allocation3], %s271
          %s273 = sshll.u32 [#allocation2], 4
          %s274 = int_to_ptr.vmem [resolvable:$true] %s273
          %279 = dma.hbm_to_vmem [thread:$0]  %s4, 32768, %s274, [#allocation3], 512, 512, 32
        $region28: #{tpu_custom_call.1} parent=11 // pred_fallthru
          _
        // Predicated region
        $region29: #{tpu_custom_call.1} parent=11 // pred_check
          %p280 = pneg %p169
        $region30: #{tpu_custom_call.1} parent=11 // pred_check_branch
          %282 = sbr.rel (%p280) target = $region32
        $region31: #{tpu_custom_call.1} parent=11 // pred_region
          _
        $region32: #{tpu_custom_call.1} parent=11 // pred_fallthru
          _
        // Predicated region
        $region33: #{tpu_custom_call.1} parent=11 // pred_check
          %p283 = pneg %p190
        $region34: #{tpu_custom_call.1} parent=11 // pred_check_branch
          %285 = sbr.rel (%p283) target = $region36
        $region35: #{tpu_custom_call.1} parent=11 // pred_region
          %s287 = ssub.s32 32768, 32768
          %288 = vsyncadd [#allocation6], %s287
          %s289 = sshll.u32 [#allocation5], 4
          %s290 = int_to_ptr.vmem [resolvable:$true] %s289
          %295 = dma.hbm_to_vmem [thread:$0]  %s6, 32768, %s290, [#allocation6], 512, 512, 32
        $region36: #{tpu_custom_call.1} parent=11 // pred_fallthru
          _
        // Predicated region
        $region37: #{tpu_custom_call.1} parent=11 // pred_check
          %p296 = pneg %p211
        $region38: #{tpu_custom_call.1} parent=11 // pred_check_branch
          %298 = sbr.rel (%p296) target = $region40
        $region39: #{tpu_custom_call.1} parent=11 // pred_region
          %s300 = ssub.s32 2048, 2048
          %301 = vsyncadd [#allocation6], %s300
          %s302 = sshll.u32 [#allocation7], 4
          %s303 = int_to_ptr.vmem [resolvable:$true] %s302
          %308 = dma.hbm_to_vmem [thread:$0]  %s7, 2048, %s303, [#allocation6], 512, 512, 32
        $region40: #{tpu_custom_call.1} parent=11 // pred_fallthru
          _
      $region12: #{tpu_custom_call.1} parent=5 // pred_fallthru
        _
      %p309 = scmp.lt.s32.totalorder %s19, 2
      // Predicated region
      $region41: #{tpu_custom_call.1} parent=5 // pred_check
        %p310 = pneg %p309
      $region42: #{tpu_custom_call.1} parent=5 // pred_check_branch
        %312 = sbr.rel (%p310) target = $region44
      $region43: #{tpu_custom_call.1} parent=5 // pred_region
        // Predicated region
        $region45: #{tpu_custom_call.1} parent=43 // pred_check
          %p313 = pneg %p53
        $region46: #{tpu_custom_call.1} parent=43 // pred_check_branch
          %315 = sbr.rel (%p313) target = $region48
        $region47: #{tpu_custom_call.1} parent=43 // pred_region
          %p316 = scmp.lt.s32.totalorder %s26, 1
          %s317 = scalar_select %p316, %s26, 1
          %p318 = scmp.lt.s32.totalorder %s27, 0
          %s319 = scalar_select %p318, %s27, 0
          %s320 = sadd.s32 %s319, %s317
          %s321 = smul.addr %s320, 8
          %s322 = scalar_lea.vmem %s0, %s321
        $region48: #{tpu_custom_call.1} parent=43 // pred_fallthru
          _
      $region44: #{tpu_custom_call.1} parent=5 // pred_fallthru
        _
      %p323 = scmp.le.s32.totalorder 1, %s19
      %p324 = scmp.lt.s32.totalorder %s19, 3
      %p325 = pnand %p323, %p324
      %p326 = pneg %p325
      // Predicated region
      $region49: #{tpu_custom_call.1} parent=5 // pred_check
        _
      $region50: #{tpu_custom_call.1} parent=5 // pred_check_branch
        %328 = sbr.rel (%p325) target = $region52
      $region51: #{tpu_custom_call.1} parent=5 // pred_region
        %s329 = ssub.s32 %s19, 1
        // Predicated region
        $region53: #{tpu_custom_call.1} parent=51 // pred_check
          %p330 = pneg %p148
        $region54: #{tpu_custom_call.1} parent=51 // pred_check_branch
          %332 = sbr.rel (%p330) target = $region56
        $region55: #{tpu_custom_call.1} parent=51 // pred_region
          %333 = dma.done [#allocation3], 32768
        $region56: #{tpu_custom_call.1} parent=51 // pred_fallthru
          _
        // Predicated region
        $region57: #{tpu_custom_call.1} parent=51 // pred_check
          %p334 = pneg %p190
        $region58: #{tpu_custom_call.1} parent=51 // pred_check_branch
          %336 = sbr.rel (%p334) target = $region60
        $region59: #{tpu_custom_call.1} parent=51 // pred_region
          %337 = dma.done [#allocation6], 32768
        $region60: #{tpu_custom_call.1} parent=51 // pred_fallthru
          _
        // Predicated region
        $region61: #{tpu_custom_call.1} parent=51 // pred_check
          %p338 = pneg %p211
        $region62: #{tpu_custom_call.1} parent=51 // pred_check_branch
          %340 = sbr.rel (%p338) target = $region64
        $region63: #{tpu_custom_call.1} parent=51 // pred_region
          %341 = dma.done [#allocation6], 2048
        $region64: #{tpu_custom_call.1} parent=51 // pred_fallthru
          _
        %p342 = scmp.lt.s32.totalorder %s28, 1
        %s343 = scalar_select %p342, %s28, 1
        %p344 = scmp.lt.s32.totalorder %s29, 0
        %s345 = scalar_select %p344, %s29, 0
        %s346 = sadd.s32 %s345, %s343
        %s347 = smul.addr %s346, 8
        %s348 = scalar_lea.vmem %s0, %s347
        %p349 = pneg %p59
        %p350 = pneg %p56
        %p351 = scmp.lt.s32.totalorder %s29, 0
        %s352 = scalar_select %p351, %s29, 0
        %s353 = smul.addr %s352, 8
        %s354 = scalar_lea.vmem %s1, %s353
        %p355 = pneg %p85
        %p356 = pneg %p82
        %p357 = pneg %p106
        %p358 = pneg %p103
        %p359 = pneg %p127
        %p360 = pneg %p124
        %p361 = pneg %p148
        %p362 = pneg %p145
        %p363 = pneg %p169
        %p364 = pneg %p166
        %p365 = pneg %p190
        %p366 = pneg %p187
        %p367 = pneg %p211
        %p368 = pneg %p208
        %p369 = pneg %p239
        %p370 = pneg %p236
        %s371 = sand.u32 %s226, 1
        %s372 = scalar_lea.sflag [#allocation4], %s371
        %s373 = sand.u32 %s226, 1
        %s374 = smul.addr %s373, 32
        %s375 = scalar_lea.vmem [#allocation8], %s374
        %p376 = scmp.lt.s32.totalorder %s28, 1
        %s377 = scalar_select %p376, %s28, 1
        %p378 = scmp.lt.s32.totalorder %s29, 0
        %s379 = scalar_select %p378, %s29, 0
        %s380 = sadd.s32 %s379, %s377
        %s381 = smul.addr %s380, 8
        %s382 = scalar_lea.vmem %s0, %s381
        %p383 = scmp.lt.s32.totalorder %s29, 0
        %s384 = scalar_select %p383, %s29, 0
        %s385 = smul.addr %s384, 8
        %s386 = scalar_lea.vmem %s1, %s385
        %v387 = vld [vmem:[%s382] sm:$0xff]
        %v388 = vld [vmem:[%s2] sm:$0xff]
        %v389 = vld [vmem:[%s2 + $0x8] sm:$0xff]
        %v390 = vld [vmem:[%s3] sm:$0xf]
        %v392 = vlaneseq
        %v393 = vshrl.u32 %v392, 7
        %v394 = vsub.s32 0, %v393
        %v395 = vrot.slane %v390, %v394
        %v396 = vlaneseq
        %v397 = vshrl.u32 %v396, 7
        %v398 = vsub.s32 1, %v397
        %v399 = vrot.slane %v390, %v398
        %v400 = vlaneseq
        %v401 = vshrl.u32 %v400, 7
        %v402 = vsub.s32 2, %v401
        %v403 = vrot.slane %v390, %v402
        %v404 = vlaneseq
        %v405 = vshrl.u32 %v404, 7
        %v406 = vsub.s32 3, %v405
        %v407 = vrot.slane %v390, %v406
        %v414 = vcombine.high %v388, %v388
        %v415 = vcombine.high %v389, %v389
        %vm416 = vcmask 31744
        %v418 = vsel %vm416, %v387, 0
        %vm420 = vcmask 1043456
        %v421 = vsel %vm420, %v388, 0
        %v423 = vsel %vm420, %v414, 0
        %v425 = vsel %vm420, %v389, 0
        %v427 = vsel %vm420, %v415, 0
        %429 = vmatprep.subr.mxu0 %v423
        %430 = vmatpush1.msra.mxu0 %v421
        %431 = vmatprep.subr.mxu0 0.0
        %432 = vmatpush1.msra.mxu0 0.0
        %433 = vmatprep.subr.mxu0 0.0
        %434 = vmatpush1.msra.mxu0 0.0
        %435 = vmatprep.subr.mxu0 0.0
        %436 = vmatpush1.msra.mxu0 0.0
        %437 = vmatprep.subr.mxu0 0.0
        %438 = vmatpush1.msra.mxu0 0.0
        %439 = vmatprep.subr.mxu0 0.0
        %440 = vmatpush1.msra.mxu0 0.0
        %441 = vmatprep.subr.mxu0 0.0
        %442 = vmatpush1.msra.mxu0 0.0
        %443 = vmatprep.subr.mxu0 0.0
        %444 = vmatpush1.msra.mxu0 0.0
        %445 = vmatprep.subr.mxu0 0.0
        %446 = vmatpush1.msra.mxu0 0.0
        %447 = vmatprep.subr.mxu0 0.0
        %448 = vmatpush1.msra.mxu0 0.0
        %449 = vmatprep.subr.mxu0 0.0
        %450 = vmatpush1.msra.mxu0 0.0
        %451 = vmatprep.subr.mxu0 0.0
        %452 = vmatpush1.msra.mxu0 0.0
        %453 = vmatprep.subr.mxu0 0.0
        %454 = vmatpush1.msra.mxu0 0.0
        %455 = vmatprep.subr.mxu0 0.0
        %456 = vmatpush1.msra.mxu0 0.0
        %457 = vmatprep.subr.mxu0 0.0
        %458 = vmatpush1.msra.mxu0 0.0
        %459 = vmatprep.subr.mxu0 0.0
        %460 = vmatpush1.msra.mxu0 0.0
        %461 = vmatprep.subr.mxu0 0.0
        %462 = vmatpush1.msra.mxu0 0.0
        %463 = vmatprep.subr.mxu0 0.0
        %464 = vmatpush1.msra.mxu0 0.0
        %465 = vmatprep.subr.mxu0 0.0
        %466 = vmatpush1.msra.mxu0 0.0
        %467 = vmatprep.subr.mxu0 0.0
        %468 = vmatpush1.msra.mxu0 0.0
        %469 = vmatprep.subr.mxu0 0.0
        %470 = vmatpush1.msra.mxu0 0.0
        %471 = vmatprep.subr.mxu0 0.0
        %472 = vmatpush1.msra.mxu0 0.0
        %473 = vmatprep.subr.mxu0 0.0
        %474 = vmatpush1.msra.mxu0 0.0
        %475 = vmatprep.subr.mxu0 0.0
        %476 = vmatpush1.msra.mxu0 0.0
        %477 = vmatprep.subr.mxu0 0.0
        %478 = vmatpush1.msra.mxu0 0.0
        %479 = vmatprep.subr.mxu0 0.0
        %480 = vmatpush1.msra.mxu0 0.0
        %481 = vmatprep.subr.mxu0 0.0
        %482 = vmatpush1.msra.mxu0 0.0
        %483 = vmatprep.subr.mxu0 0.0
        %484 = vmatpush1.msra.mxu0 0.0
        %485 = vmatprep.subr.mxu0 0.0
        %486 = vmatpush1.msra.mxu0 0.0
        %487 = vmatprep.subr.mxu0 0.0
        %488 = vmatpush1.msra.mxu0 0.0
        %489 = vmatprep.subr.mxu0 0.0
        %490 = vmatpush1.msra.mxu0 0.0
        %491 = vmatprep.subr.mxu0 0.0
        %492 = vmatpush1.msra.mxu0 0.0
        %493 = vmatprep.mubr.f32.mxu0 0.0
        %494 = vmatmul.mubr.f32.gmra.mrb[0].mxu0 %v418
        %v495 = vpop.f32.mrb[0].mxu0
        %v496 = vadd.f32 %v395, %v495
        %v497 = vpop.f32.mrb[0].mxu0
        %v498 = vadd.f32 %v399, %v497
        %499 = vdwg.mxu0
        %500 = vmatprep.subr.mxu0 %v427
        %501 = vmatpush1.msra.mxu0 %v425
        %502 = vmatprep.subr.mxu0 0.0
        %503 = vmatpush1.msra.mxu0 0.0
        %504 = vmatprep.subr.mxu0 0.0
        %505 = vmatpush1.msra.mxu0 0.0
        %506 = vmatprep.subr.mxu0 0.0
        %507 = vmatpush1.msra.mxu0 0.0
        %508 = vmatprep.subr.mxu0 0.0
        %509 = vmatpush1.msra.mxu0 0.0
        %510 = vmatprep.subr.mxu0 0.0
        %511 = vmatpush1.msra.mxu0 0.0
        %512 = vmatprep.subr.mxu0 0.0
        %513 = vmatpush1.msra.mxu0 0.0
        %514 = vmatprep.subr.mxu0 0.0
        %515 = vmatpush1.msra.mxu0 0.0
        %516 = vmatprep.subr.mxu0 0.0
        %517 = vmatpush1.msra.mxu0 0.0
        %518 = vmatprep.subr.mxu0 0.0
        %519 = vmatpush1.msra.mxu0 0.0
        %520 = vmatprep.subr.mxu0 0.0
        %521 = vmatpush1.msra.mxu0 0.0
        %522 = vmatprep.subr.mxu0 0.0
        %523 = vmatpush1.msra.mxu0 0.0
        %524 = vmatprep.subr.mxu0 0.0
        %525 = vmatpush1.msra.mxu0 0.0
        %526 = vmatprep.subr.mxu0 0.0
        %527 = vmatpush1.msra.mxu0 0.0
        %528 = vmatprep.subr.mxu0 0.0
        %529 = vmatpush1.msra.mxu0 0.0
        %530 = vmatprep.subr.mxu0 0.0
        %531 = vmatpush1.msra.mxu0 0.0
        %532 = vmatprep.subr.mxu0 0.0
        %533 = vmatpush1.msra.mxu0 0.0
        %534 = vmatprep.subr.mxu0 0.0
        %535 = vmatpush1.msra.mxu0 0.0
        %536 = vmatprep.subr.mxu0 0.0
        %537 = vmatpush1.msra.mxu0 0.0
        %538 = vmatprep.subr.mxu0 0.0
        %539 = vmatpush1.msra.mxu0 0.0
        %540 = vmatprep.subr.mxu0 0.0
        %541 = vmatpush1.msra.mxu0 0.0
        %542 = vmatprep.subr.mxu0 0.0
        %543 = vmatpush1.msra.mxu0 0.0
        %544 = vmatprep.subr.mxu0 0.0
        %545 = vmatpush1.msra.mxu0 0.0
        %546 = vmatprep.subr.mxu0 0.0
        %547 = vmatpush1.msra.mxu0 0.0
        %548 = vmatprep.subr.mxu0 0.0
        %549 = vmatpush1.msra.mxu0 0.0
        %550 = vmatprep.subr.mxu0 0.0
        %551 = vmatpush1.msra.mxu0 0.0
        %552 = vmatprep.subr.mxu0 0.0
        %553 = vmatpush1.msra.mxu0 0.0
        %554 = vmatprep.subr.mxu0 0.0
        %555 = vmatpush1.msra.mxu0 0.0
        %556 = vmatprep.subr.mxu0 0.0
        %557 = vmatpush1.msra.mxu0 0.0
        %558 = vmatprep.subr.mxu0 0.0
        %559 = vmatpush1.msra.mxu0 0.0
        %560 = vmatprep.subr.mxu0 0.0
        %561 = vmatpush1.msra.mxu0 0.0
        %562 = vmatprep.subr.mxu0 0.0
        %563 = vmatpush1.msra.mxu0 0.0
        %564 = vmatprep.mubr.f32.mxu0 0.0
        %565 = vmatmul.mubr.f32.gmra.mrb[0].mxu0 %v418
        %v566 = vpop.f32.mrb[0].mxu0
        %v567 = vadd.f32 %v403, %v566
        %v568 = vpop.f32.mrb[0].mxu0
        %v569 = vadd.f32 %v407, %v568
        %570 = vdwg.mxu0
        %vm571 = vcmp.ge.f32.partialorder %v496, 0.0
        %vm572 = vcmp.ge.f32.partialorder %v498, 0.0
        %vm573 = vcmp.ge.f32.partialorder %v567, 0.0
        %vm574 = vcmp.ge.f32.partialorder %v569, 0.0
        %v575 = vmul.f32 %v496, 0.01
        %v576 = vmul.f32 %v498, 0.01
        %v577 = vmul.f32 %v567, 0.01
        %v578 = vmul.f32 %v569, 0.01
        %v579 = vsel %vm571, %v496, %v575
        %v580 = vsel %vm572, %v498, %v576
        %v581 = vsel %vm573, %v567, %v577
        %v582 = vsel %vm574, %v569, %v578
        %v583 = vld [vmem:[#allocation2] sm:$0xff]
        %v584 = vld [vmem:[#allocation2 + $0x8] sm:$0xff]
        %v585 = vld [vmem:[#allocation2 + $0x10] sm:$0xff]
        %v586 = vld [vmem:[#allocation2 + $0x18] sm:$0xff]
        %v587 = vld [vmem:[#allocation2 + $0x20] sm:$0xff]
        %v588 = vld [vmem:[#allocation2 + $0x28] sm:$0xff]
        %v589 = vld [vmem:[#allocation2 + $0x30] sm:$0xff]
        %v590 = vld [vmem:[#allocation2 + $0x38] sm:$0xff]
        %v591 = vld [vmem:[#allocation2 + $0x40] sm:$0xff]
        %v592 = vld [vmem:[#allocation2 + $0x48] sm:$0xff]
        %v593 = vld [vmem:[#allocation2 + $0x50] sm:$0xff]
        %v594 = vld [vmem:[#allocation2 + $0x58] sm:$0xff]
        %v595 = vld [vmem:[#allocation2 + $0x60] sm:$0xff]
        %v596 = vld [vmem:[#allocation2 + $0x68] sm:$0xff]
        %v597 = vld [vmem:[#allocation2 + $0x70] sm:$0xff]
        %v598 = vld [vmem:[#allocation2 + $0x78] sm:$0xff]
        %v599 = vld [vmem:[#allocation2 + $0x80] sm:$0xff]
        %v600 = vld [vmem:[#allocation2 + $0x88] sm:$0xff]
        %v601 = vld [vmem:[#allocation2 + $0x90] sm:$0xff]
        %v602 = vld [vmem:[#allocation2 + $0x98] sm:$0xff]
        %v603 = vld [vmem:[#allocation2 + $0xa0] sm:$0xff]
        %v604 = vld [vmem:[#allocation2 + $0xa8] sm:$0xff]
        %v605 = vld [vmem:[#allocation2 + $0xb0] sm:$0xff]
        %v606 = vld [vmem:[#allocation2 + $0xb8] sm:$0xff]
        %v607 = vld [vmem:[#allocation2 + $0xc0] sm:$0xff]
        %v608 = vld [vmem:[#allocation2 + $0xc8] sm:$0xff]
        %v609 = vld [vmem:[#allocation2 + $0xd0] sm:$0xff]
        %v610 = vld [vmem:[#allocation2 + $0xd8] sm:$0xff]
        %v611 = vld [vmem:[#allocation2 + $0xe0] sm:$0xff]
        %v612 = vld [vmem:[#allocation2 + $0xe8] sm:$0xff]
        %v613 = vld [vmem:[#allocation2 + $0xf0] sm:$0xff]
        %v614 = vld [vmem:[#allocation2 + $0xf8] sm:$0xff]
        %v615 = vld [vmem:[#allocation2 + $0x100] sm:$0xff]
        %v616 = vld [vmem:[#allocation2 + $0x108] sm:$0xff]
        %v617 = vld [vmem:[#allocation2 + $0x110] sm:$0xff]
        %v618 = vld [vmem:[#allocation2 + $0x118] sm:$0xff]
        %v619 = vld [vmem:[#allocation2 + $0x120] sm:$0xff]
        %v620 = vld [vmem:[#allocation2 + $0x128] sm:$0xff]
        %v621 = vld [vmem:[#allocation2 + $0x130] sm:$0xff]
        %v622 = vld [vmem:[#allocation2 + $0x138] sm:$0xff]
        %v623 = vld [vmem:[#allocation2 + $0x140] sm:$0xff]
        %v624 = vld [vmem:[#allocation2 + $0x148] sm:$0xff]
        %v625 = vld [vmem:[#allocation2 + $0x150] sm:$0xff]
        %v626 = vld [vmem:[#allocation2 + $0x158] sm:$0xff]
        %v627 = vld [vmem:[#allocation2 + $0x160] sm:$0xff]
        %v628 = vld [vmem:[#allocation2 + $0x168] sm:$0xff]
        %v629 = vld [vmem:[#allocation2 + $0x170] sm:$0xff]
        %v630 = vld [vmem:[#allocation2 + $0x178] sm:$0xff]
        %v631 = vld [vmem:[#allocation2 + $0x180] sm:$0xff]
        %v632 = vld [vmem:[#allocation2 + $0x188] sm:$0xff]
        %v633 = vld [vmem:[#allocation2 + $0x190] sm:$0xff]
        %v634 = vld [vmem:[#allocation2 + $0x198] sm:$0xff]
        %v635 = vld [vmem:[#allocation2 + $0x1a0] sm:$0xff]
        %v636 = vld [vmem:[#allocation2 + $0x1a8] sm:$0xff]
        %v637 = vld [vmem:[#allocation2 + $0x1b0] sm:$0xff]
        %v638 = vld [vmem:[#allocation2 + $0x1b8] sm:$0xff]
        %v639 = vld [vmem:[#allocation2 + $0x1c0] sm:$0xff]
        %v640 = vld [vmem:[#allocation2 + $0x1c8] sm:$0xff]
        %v641 = vld [vmem:[#allocation2 + $0x1d0] sm:$0xff]
        %v642 = vld [vmem:[#allocation2 + $0x1d8] sm:$0xff]
        %v643 = vld [vmem:[#allocation2 + $0x1e0] sm:$0xff]
        %v644 = vld [vmem:[#allocation2 + $0x1e8] sm:$0xff]
        %v645 = vld [vmem:[#allocation2 + $0x1f0] sm:$0xff]
        %v646 = vld [vmem:[#allocation2 + $0x1f8] sm:$0xff]
        %v647 = vld [vmem:[#allocation2 + $0x200] sm:$0xff]
        %v648 = vld [vmem:[#allocation2 + $0x208] sm:$0xff]
        %v649 = vld [vmem:[#allocation2 + $0x210] sm:$0xff]
        %v650 = vld [vmem:[#allocation2 + $0x218] sm:$0xff]
        %v651 = vld [vmem:[#allocation2 + $0x220] sm:$0xff]
        %v652 = vld [vmem:[#allocation2 + $0x228] sm:$0xff]
        %v653 = vld [vmem:[#allocation2 + $0x230] sm:$0xff]
        %v654 = vld [vmem:[#allocation2 + $0x238] sm:$0xff]
        %v655 = vld [vmem:[#allocation2 + $0x240] sm:$0xff]
        %v656 = vld [vmem:[#allocation2 + $0x248] sm:$0xff]
        %v657 = vld [vmem:[#allocation2 + $0x250] sm:$0xff]
        %v658 = vld [vmem:[#allocation2 + $0x258] sm:$0xff]
        %v659 = vld [vmem:[#allocation2 + $0x260] sm:$0xff]
        %v660 = vld [vmem:[#allocation2 + $0x268] sm:$0xff]
        %v661 = vld [vmem:[#allocation2 + $0x270] sm:$0xff]
        %v662 = vld [vmem:[#allocation2 + $0x278] sm:$0xff]
        %v663 = vld [vmem:[#allocation2 + $0x280] sm:$0xff]
        %v664 = vld [vmem:[#allocation2 + $0x288] sm:$0xff]
        %v665 = vld [vmem:[#allocation2 + $0x290] sm:$0xff]
        %v666 = vld [vmem:[#allocation2 + $0x298] sm:$0xff]
        %v667 = vld [vmem:[#allocation2 + $0x2a0] sm:$0xff]
        %v668 = vld [vmem:[#allocation2 + $0x2a8] sm:$0xff]
        %v669 = vld [vmem:[#allocation2 + $0x2b0] sm:$0xff]
        %v670 = vld [vmem:[#allocation2 + $0x2b8] sm:$0xff]
        %v671 = vld [vmem:[#allocation2 + $0x2c0] sm:$0xff]
        %v672 = vld [vmem:[#allocation2 + $0x2c8] sm:$0xff]
        %v673 = vld [vmem:[#allocation2 + $0x2d0] sm:$0xff]
        %v674 = vld [vmem:[#allocation2 + $0x2d8] sm:$0xff]
        %v675 = vld [vmem:[#allocation2 + $0x2e0] sm:$0xff]
        %v676 = vld [vmem:[#allocation2 + $0x2e8] sm:$0xff]
        %v677 = vld [vmem:[#allocation2 + $0x2f0] sm:$0xff]
        %v678 = vld [vmem:[#allocation2 + $0x2f8] sm:$0xff]
        %v679 = vld [vmem:[#allocation2 + $0x300] sm:$0xff]
        %v680 = vld [vmem:[#allocation2 + $0x308] sm:$0xff]
        %v681 = vld [vmem:[#allocation2 + $0x310] sm:$0xff]
        %v682 = vld [vmem:[#allocation2 + $0x318] sm:$0xff]
        %v683 = vld [vmem:[#allocation2 + $0x320] sm:$0xff]
        %v684 = vld [vmem:[#allocation2 + $0x328] sm:$0xff]
        %v685 = vld [vmem:[#allocation2 + $0x330] sm:$0xff]
        %v686 = vld [vmem:[#allocation2 + $0x338] sm:$0xff]
        %v687 = vld [vmem:[#allocation2 + $0x340] sm:$0xff]
        %v688 = vld [vmem:[#allocation2 + $0x348] sm:$0xff]
        %v689 = vld [vmem:[#allocation2 + $0x350] sm:$0xff]
        %v690 = vld [vmem:[#allocation2 + $0x358] sm:$0xff]
        %v691 = vld [vmem:[#allocation2 + $0x360] sm:$0xff]
        %v692 = vld [vmem:[#allocation2 + $0x368] sm:$0xff]
        %v693 = vld [vmem:[#allocation2 + $0x370] sm:$0xff]
        %v694 = vld [vmem:[#allocation2 + $0x378] sm:$0xff]
        %v695 = vld [vmem:[#allocation2 + $0x380] sm:$0xff]
        %v696 = vld [vmem:[#allocation2 + $0x388] sm:$0xff]
        %v697 = vld [vmem:[#allocation2 + $0x390] sm:$0xff]
        %v698 = vld [vmem:[#allocation2 + $0x398] sm:$0xff]
        %v699 = vld [vmem:[#allocation2 + $0x3a0] sm:$0xff]
        %v700 = vld [vmem:[#allocation2 + $0x3a8] sm:$0xff]
        %v701 = vld [vmem:[#allocation2 + $0x3b0] sm:$0xff]
        %v702 = vld [vmem:[#allocation2 + $0x3b8] sm:$0xff]
        %v703 = vld [vmem:[#allocation2 + $0x3c0] sm:$0xff]
        %v704 = vld [vmem:[#allocation2 + $0x3c8] sm:$0xff]
        %v705 = vld [vmem:[#allocation2 + $0x3d0] sm:$0xff]
        %v706 = vld [vmem:[#allocation2 + $0x3d8] sm:$0xff]
        %v707 = vld [vmem:[#allocation2 + $0x3e0] sm:$0xff]
        %v708 = vld [vmem:[#allocation2 + $0x3e8] sm:$0xff]
        %v709 = vld [vmem:[#allocation2 + $0x3f0] sm:$0xff]
        %v710 = vld [vmem:[#allocation2 + $0x3f8] sm:$0xff]
        %v711 = vld [vmem:[#allocation2 + $0x400] sm:$0xff]
        %v712 = vld [vmem:[#allocation2 + $0x408] sm:$0xff]
        %v713 = vld [vmem:[#allocation2 + $0x410] sm:$0xff]
        %v714 = vld [vmem:[#allocation2 + $0x418] sm:$0xff]
        %v715 = vld [vmem:[#allocation2 + $0x420] sm:$0xff]
        %v716 = vld [vmem:[#allocation2 + $0x428] sm:$0xff]
        %v717 = vld [vmem:[#allocation2 + $0x430] sm:$0xff]
        %v718 = vld [vmem:[#allocation2 + $0x438] sm:$0xff]
        %v719 = vld [vmem:[#allocation2 + $0x440] sm:$0xff]
        %v720 = vld [vmem:[#allocation2 + $0x448] sm:$0xff]
        %v721 = vld [vmem:[#allocation2 + $0x450] sm:$0xff]
        %v722 = vld [vmem:[#allocation2 + $0x458] sm:$0xff]
        %v723 = vld [vmem:[#allocation2 + $0x460] sm:$0xff]
        %v724 = vld [vmem:[#allocation2 + $0x468] sm:$0xff]
        %v725 = vld [vmem:[#allocation2 + $0x470] sm:$0xff]
        %v726 = vld [vmem:[#allocation2 + $0x478] sm:$0xff]
        %v727 = vld [vmem:[#allocation2 + $0x480] sm:$0xff]
        %v728 = vld [vmem:[#allocation2 + $0x488] sm:$0xff]
        %v729 = vld [vmem:[#allocation2 + $0x490] sm:$0xff]
        %v730 = vld [vmem:[#allocation2 + $0x498] sm:$0xff]
        %v731 = vld [vmem:[#allocation2 + $0x4a0] sm:$0xff]
        %v732 = vld [vmem:[#allocation2 + $0x4a8] sm:$0xff]
        %v733 = vld [vmem:[#allocation2 + $0x4b0] sm:$0xff]
        %v734 = vld [vmem:[#allocation2 + $0x4b8] sm:$0xff]
        %v735 = vld [vmem:[#allocation2 + $0x4c0] sm:$0xff]
        %v736 = vld [vmem:[#allocation2 + $0x4c8] sm:$0xff]
        %v737 = vld [vmem:[#allocation2 + $0x4d0] sm:$0xff]
        %v738 = vld [vmem:[#allocation2 + $0x4d8] sm:$0xff]
        %v739 = vld [vmem:[#allocation2 + $0x4e0] sm:$0xff]
        %v740 = vld [vmem:[#allocation2 + $0x4e8] sm:$0xff]
        %v741 = vld [vmem:[#allocation2 + $0x4f0] sm:$0xff]
        %v742 = vld [vmem:[#allocation2 + $0x4f8] sm:$0xff]
        %v743 = vld [vmem:[#allocation2 + $0x500] sm:$0xff]
        %v744 = vld [vmem:[#allocation2 + $0x508] sm:$0xff]
        %v745 = vld [vmem:[#allocation2 + $0x510] sm:$0xff]
        %v746 = vld [vmem:[#allocation2 + $0x518] sm:$0xff]
        %v747 = vld [vmem:[#allocation2 + $0x520] sm:$0xff]
        %v748 = vld [vmem:[#allocation2 + $0x528] sm:$0xff]
        %v749 = vld [vmem:[#allocation2 + $0x530] sm:$0xff]
        %v750 = vld [vmem:[#allocation2 + $0x538] sm:$0xff]
        %v751 = vld [vmem:[#allocation2 + $0x540] sm:$0xff]
        %v752 = vld [vmem:[#allocation2 + $0x548] sm:$0xff]
        %v753 = vld [vmem:[#allocation2 + $0x550] sm:$0xff]
        %v754 = vld [vmem:[#allocation2 + $0x558] sm:$0xff]
        %v755 = vld [vmem:[#allocation2 + $0x560] sm:$0xff]
        %v756 = vld [vmem:[#allocation2 + $0x568] sm:$0xff]
        %v757 = vld [vmem:[#allocation2 + $0x570] sm:$0xff]
        %v758 = vld [vmem:[#allocation2 + $0x578] sm:$0xff]
        %v759 = vld [vmem:[#allocation2 + $0x580] sm:$0xff]
        %v760 = vld [vmem:[#allocation2 + $0x588] sm:$0xff]
        %v761 = vld [vmem:[#allocation2 + $0x590] sm:$0xff]
        %v762 = vld [vmem:[#allocation2 + $0x598] sm:$0xff]
        %v763 = vld [vmem:[#allocation2 + $0x5a0] sm:$0xff]
        %v764 = vld [vmem:[#allocation2 + $0x5a8] sm:$0xff]
        %v765 = vld [vmem:[#allocation2 + $0x5b0] sm:$0xff]
        %v766 = vld [vmem:[#allocation2 + $0x5b8] sm:$0xff]
        %v767 = vld [vmem:[#allocation2 + $0x5c0] sm:$0xff]
        %v768 = vld [vmem:[#allocation2 + $0x5c8] sm:$0xff]
        %v769 = vld [vmem:[#allocation2 + $0x5d0] sm:$0xff]
        %v770 = vld [vmem:[#allocation2 + $0x5d8] sm:$0xff]
        %v771 = vld [vmem:[#allocation2 + $0x5e0] sm:$0xff]
        %v772 = vld [vmem:[#allocation2 + $0x5e8] sm:$0xff]
        %v773 = vld [vmem:[#allocation2 + $0x5f0] sm:$0xff]
        %v774 = vld [vmem:[#allocation2 + $0x5f8] sm:$0xff]
        %v775 = vld [vmem:[#allocation2 + $0x600] sm:$0xff]
        %v776 = vld [vmem:[#allocation2 + $0x608] sm:$0xff]
        %v777 = vld [vmem:[#allocation2 + $0x610] sm:$0xff]
        %v778 = vld [vmem:[#allocation2 + $0x618] sm:$0xff]
        %v779 = vld [vmem:[#allocation2 + $0x620] sm:$0xff]
        %v780 = vld [vmem:[#allocation2 + $0x628] sm:$0xff]
        %v781 = vld [vmem:[#allocation2 + $0x630] sm:$0xff]
        %v782 = vld [vmem:[#allocation2 + $0x638] sm:$0xff]
        %v783 = vld [vmem:[#allocation2 + $0x640] sm:$0xff]
        %v784 = vld [vmem:[#allocation2 + $0x648] sm:$0xff]
        %v785 = vld [vmem:[#allocation2 + $0x650] sm:$0xff]
        %v786 = vld [vmem:[#allocation2 + $0x658] sm:$0xff]
        %v787 = vld [vmem:[#allocation2 + $0x660] sm:$0xff]
        %v788 = vld [vmem:[#allocation2 + $0x668] sm:$0xff]
        %v789 = vld [vmem:[#allocation2 + $0x670] sm:$0xff]
        %v790 = vld [vmem:[#allocation2 + $0x678] sm:$0xff]
        %v791 = vld [vmem:[#allocation2 + $0x680] sm:$0xff]
        %v792 = vld [vmem:[#allocation2 + $0x688] sm:$0xff]
        %v793 = vld [vmem:[#allocation2 + $0x690] sm:$0xff]
        %v794 = vld [vmem:[#allocation2 + $0x698] sm:$0xff]
        %v795 = vld [vmem:[#allocation2 + $0x6a0] sm:$0xff]
        %v796 = vld [vmem:[#allocation2 + $0x6a8] sm:$0xff]
        %v797 = vld [vmem:[#allocation2 + $0x6b0] sm:$0xff]
        %v798 = vld [vmem:[#allocation2 + $0x6b8] sm:$0xff]
        %v799 = vld [vmem:[#allocation2 + $0x6c0] sm:$0xff]
        %v800 = vld [vmem:[#allocation2 + $0x6c8] sm:$0xff]
        %v801 = vld [vmem:[#allocation2 + $0x6d0] sm:$0xff]
        %v802 = vld [vmem:[#allocation2 + $0x6d8] sm:$0xff]
        %v803 = vld [vmem:[#allocation2 + $0x6e0] sm:$0xff]
        %v804 = vld [vmem:[#allocation2 + $0x6e8] sm:$0xff]
        %v805 = vld [vmem:[#allocation2 + $0x6f0] sm:$0xff]
        %v806 = vld [vmem:[#allocation2 + $0x6f8] sm:$0xff]
        %v807 = vld [vmem:[#allocation2 + $0x700] sm:$0xff]
        %v808 = vld [vmem:[#allocation2 + $0x708] sm:$0xff]
        %v809 = vld [vmem:[#allocation2 + $0x710] sm:$0xff]
        %v810 = vld [vmem:[#allocation2 + $0x718] sm:$0xff]
        %v811 = vld [vmem:[#allocation2 + $0x720] sm:$0xff]
        %v812 = vld [vmem:[#allocation2 + $0x728] sm:$0xff]
        %v813 = vld [vmem:[#allocation2 + $0x730] sm:$0xff]
        %v814 = vld [vmem:[#allocation2 + $0x738] sm:$0xff]
        %v815 = vld [vmem:[#allocation2 + $0x740] sm:$0xff]
        %v816 = vld [vmem:[#allocation2 + $0x748] sm:$0xff]
        %v817 = vld [vmem:[#allocation2 + $0x750] sm:$0xff]
        %v818 = vld [vmem:[#allocation2 + $0x758] sm:$0xff]
        %v819 = vld [vmem:[#allocation2 + $0x760] sm:$0xff]
        %v820 = vld [vmem:[#allocation2 + $0x768] sm:$0xff]
        %v821 = vld [vmem:[#allocation2 + $0x770] sm:$0xff]
        %v822 = vld [vmem:[#allocation2 + $0x778] sm:$0xff]
        %v823 = vld [vmem:[#allocation2 + $0x780] sm:$0xff]
        %v824 = vld [vmem:[#allocation2 + $0x788] sm:$0xff]
        %v825 = vld [vmem:[#allocation2 + $0x790] sm:$0xff]
        %v826 = vld [vmem:[#allocation2 + $0x798] sm:$0xff]
        %v827 = vld [vmem:[#allocation2 + $0x7a0] sm:$0xff]
        %v828 = vld [vmem:[#allocation2 + $0x7a8] sm:$0xff]
        %v829 = vld [vmem:[#allocation2 + $0x7b0] sm:$0xff]
        %v830 = vld [vmem:[#allocation2 + $0x7b8] sm:$0xff]
        %v831 = vld [vmem:[#allocation2 + $0x7c0] sm:$0xff]
        %v832 = vld [vmem:[#allocation2 + $0x7c8] sm:$0xff]
        %v833 = vld [vmem:[#allocation2 + $0x7d0] sm:$0xff]
        %v834 = vld [vmem:[#allocation2 + $0x7d8] sm:$0xff]
        %v835 = vld [vmem:[#allocation2 + $0x7e0] sm:$0xff]
        %v836 = vld [vmem:[#allocation2 + $0x7e8] sm:$0xff]
        %v837 = vld [vmem:[#allocation2 + $0x7f0] sm:$0xff]
        %v838 = vld [vmem:[#allocation2 + $0x7f8] sm:$0xff]
        %v839 = vld [vmem:[%s5] sm:$0xf]
        %v841 = vlaneseq
        %v842 = vshrl.u32 %v841, 7
        %v843 = vsub.s32 0, %v842
        %v844 = vrot.slane %v839, %v843
        %v845 = vlaneseq
        %v846 = vshrl.u32 %v845, 7
        %v847 = vsub.s32 1, %v846
        %v848 = vrot.slane %v839, %v847
        %v849 = vlaneseq
        %v850 = vshrl.u32 %v849, 7
        %v851 = vsub.s32 2, %v850
        %v852 = vrot.slane %v839, %v851
        %v853 = vlaneseq
        %v854 = vshrl.u32 %v853, 7
        %v855 = vsub.s32 3, %v854
        %v856 = vrot.slane %v839, %v855
        %861 = vmatprep.subr.mxu0 %v584
        %862 = vmatpush1.msra.mxu0 %v583
        %863 = vmatprep.subr.mxu0 %v588
        %864 = vmatpush1.msra.mxu0 %v587
        %865 = vmatprep.subr.mxu0 %v592
        %866 = vmatpush1.msra.mxu0 %v591
        %867 = vmatprep.subr.mxu0 %v596
        %868 = vmatpush1.msra.mxu0 %v595
        %869 = vmatprep.subr.mxu0 %v600
        %870 = vmatpush1.msra.mxu0 %v599
        %871 = vmatprep.subr.mxu0 %v604
        %872 = vmatpush1.msra.mxu0 %v603
        %873 = vmatprep.subr.mxu0 %v608
        %874 = vmatpush1.msra.mxu0 %v607
        %875 = vmatprep.subr.mxu0 %v612
        %876 = vmatpush1.msra.mxu0 %v611
        %877 = vmatprep.subr.mxu0 %v616
        %878 = vmatpush1.msra.mxu0 %v615
        %879 = vmatprep.subr.mxu0 %v620
        %880 = vmatpush1.msra.mxu0 %v619
        %881 = vmatprep.subr.mxu0 %v624
        %882 = vmatpush1.msra.mxu0 %v623
        %883 = vmatprep.subr.mxu0 %v628
        %884 = vmatpush1.msra.mxu0 %v627
        %885 = vmatprep.subr.mxu0 %v632
        %886 = vmatpush1.msra.mxu0 %v631
        %887 = vmatprep.subr.mxu0 %v636
        %888 = vmatpush1.msra.mxu0 %v635
        %889 = vmatprep.subr.mxu0 %v640
        %890 = vmatpush1.msra.mxu0 %v639
        %891 = vmatprep.subr.mxu0 %v644
        %892 = vmatpush1.msra.mxu0 %v643
        %893 = vmatprep.subr.mxu0 %v648
        %894 = vmatpush1.msra.mxu0 %v647
        %895 = vmatprep.subr.mxu0 %v652
        %896 = vmatpush1.msra.mxu0 %v651
        %897 = vmatprep.subr.mxu0 %v656
        %898 = vmatpush1.msra.mxu0 %v655
        %899 = vmatprep.subr.mxu0 %v660
        %900 = vmatpush1.msra.mxu0 %v659
        %901 = vmatprep.subr.mxu0 %v664
        %902 = vmatpush1.msra.mxu0 %v663
        %903 = vmatprep.subr.mxu0 %v668
        %904 = vmatpush1.msra.mxu0 %v667
        %905 = vmatprep.subr.mxu0 %v672
        %906 = vmatpush1.msra.mxu0 %v671
        %907 = vmatprep.subr.mxu0 %v676
        %908 = vmatpush1.msra.mxu0 %v675
        %909 = vmatprep.subr.mxu0 %v680
        %910 = vmatpush1.msra.mxu0 %v679
        %911 = vmatprep.subr.mxu0 %v684
        %912 = vmatpush1.msra.mxu0 %v683
        %913 = vmatprep.subr.mxu0 %v688
        %914 = vmatpush1.msra.mxu0 %v687
        %915 = vmatprep.subr.mxu0 %v692
        %916 = vmatpush1.msra.mxu0 %v691
        %917 = vmatprep.subr.mxu0 %v696
        %918 = vmatpush1.msra.mxu0 %v695
        %919 = vmatprep.subr.mxu0 %v700
        %920 = vmatpush1.msra.mxu0 %v699
        %921 = vmatprep.subr.mxu0 %v704
        %922 = vmatpush1.msra.mxu0 %v703
        %923 = vmatprep.subr.mxu0 %v708
        %924 = vmatpush1.msra.mxu0 %v707
        %925 = vmatprep.mubr.f32.mxu0 %v580
        %926 = vmatmul.mubr.f32.gmra.mrb[0].mxu0 %v579
        %v927 = vpop.f32.mrb[0].mxu0
        %v928 = vadd.f32 %v844, %v927
        %v929 = vpop.f32.mrb[0].mxu0
        %v930 = vadd.f32 %v848, %v929
        %931 = vdwg.mxu0
        %932 = vmatprep.subr.mxu0 %v712
        %933 = vmatpush1.msra.mxu0 %v711
        %934 = vmatprep.subr.mxu0 %v716
        %935 = vmatpush1.msra.mxu0 %v715
        %936 = vmatprep.subr.mxu0 %v720
        %937 = vmatpush1.msra.mxu0 %v719
        %938 = vmatprep.subr.mxu0 %v724
        %939 = vmatpush1.msra.mxu0 %v723
        %940 = vmatprep.subr.mxu0 %v728
        %941 = vmatpush1.msra.mxu0 %v727
        %942 = vmatprep.subr.mxu0 %v732
        %943 = vmatpush1.msra.mxu0 %v731
        %944 = vmatprep.subr.mxu0 %v736
        %945 = vmatpush1.msra.mxu0 %v735
        %946 = vmatprep.subr.mxu0 %v740
        %947 = vmatpush1.msra.mxu0 %v739
        %948 = vmatprep.subr.mxu0 %v744
        %949 = vmatpush1.msra.mxu0 %v743
        %950 = vmatprep.subr.mxu0 %v748
        %951 = vmatpush1.msra.mxu0 %v747
        %952 = vmatprep.subr.mxu0 %v752
        %953 = vmatpush1.msra.mxu0 %v751
        %954 = vmatprep.subr.mxu0 %v756
        %955 = vmatpush1.msra.mxu0 %v755
        %956 = vmatprep.subr.mxu0 %v760
        %957 = vmatpush1.msra.mxu0 %v759
        %958 = vmatprep.subr.mxu0 %v764
        %959 = vmatpush1.msra.mxu0 %v763
        %960 = vmatprep.subr.mxu0 %v768
        %961 = vmatpush1.msra.mxu0 %v767
        %962 = vmatprep.subr.mxu0 %v772
        %963 = vmatpush1.msra.mxu0 %v771
        %964 = vmatprep.subr.mxu0 %v776
        %965 = vmatpush1.msra.mxu0 %v775
        %966 = vmatprep.subr.mxu0 %v780
        %967 = vmatpush1.msra.mxu0 %v779
        %968 = vmatprep.subr.mxu0 %v784
        %969 = vmatpush1.msra.mxu0 %v783
        %970 = vmatprep.subr.mxu0 %v788
        %971 = vmatpush1.msra.mxu0 %v787
        %972 = vmatprep.subr.mxu0 %v792
        %973 = vmatpush1.msra.mxu0 %v791
        %974 = vmatprep.subr.mxu0 %v796
        %975 = vmatpush1.msra.mxu0 %v795
        %976 = vmatprep.subr.mxu0 %v800
        %977 = vmatpush1.msra.mxu0 %v799
        %978 = vmatprep.subr.mxu0 %v804
        %979 = vmatpush1.msra.mxu0 %v803
        %980 = vmatprep.subr.mxu0 %v808
        %981 = vmatpush1.msra.mxu0 %v807
        %982 = vmatprep.subr.mxu0 %v812
        %983 = vmatpush1.msra.mxu0 %v811
        %984 = vmatprep.subr.mxu0 %v816
        %985 = vmatpush1.msra.mxu0 %v815
        %986 = vmatprep.subr.mxu0 %v820
        %987 = vmatpush1.msra.mxu0 %v819
        %988 = vmatprep.subr.mxu0 %v824
        %989 = vmatpush1.msra.mxu0 %v823
        %990 = vmatprep.subr.mxu0 %v828
        %991 = vmatpush1.msra.mxu0 %v827
        %992 = vmatprep.subr.mxu0 %v832
        %993 = vmatpush1.msra.mxu0 %v831
        %994 = vmatprep.subr.mxu0 %v836
        %995 = vmatpush1.msra.mxu0 %v835
        %996 = vmatprep.mubr.f32.mxu0 %v582
        %997 = vmatmul.mubr.f32.gmra.mrb[0].mxu0 %v581
        %v998 = vpop.f32.mrb[0].mxu0
        %v999 = vadd.f32 %v928, %v998
        %v1000 = vpop.f32.mrb[0].mxu0
        %v1001 = vadd.f32 %v930, %v1000
        %1002 = vdwg.mxu0
        %1003 = vmatprep.subr.mxu0 %v586
        %1004 = vmatpush1.msra.mxu0 %v585
        %1005 = vmatprep.subr.mxu0 %v590
        %1006 = vmatpush1.msra.mxu0 %v589
        %1007 = vmatprep.subr.mxu0 %v594
        %1008 = vmatpush1.msra.mxu0 %v593
        %1009 = vmatprep.subr.mxu0 %v598
        %1010 = vmatpush1.msra.mxu0 %v597
        %1011 = vmatprep.subr.mxu0 %v602
        %1012 = vmatpush1.msra.mxu0 %v601
        %1013 = vmatprep.subr.mxu0 %v606
        %1014 = vmatpush1.msra.mxu0 %v605
        %1015 = vmatprep.subr.mxu0 %v610
        %1016 = vmatpush1.msra.mxu0 %v609
        %1017 = vmatprep.subr.mxu0 %v614
        %1018 = vmatpush1.msra.mxu0 %v613
        %1019 = vmatprep.subr.mxu0 %v618
        %1020 = vmatpush1.msra.mxu0 %v617
        %1021 = vmatprep.subr.mxu0 %v622
        %1022 = vmatpush1.msra.mxu0 %v621
        %1023 = vmatprep.subr.mxu0 %v626
        %1024 = vmatpush1.msra.mxu0 %v625
        %1025 = vmatprep.subr.mxu0 %v630
        %1026 = vmatpush1.msra.mxu0 %v629
        %1027 = vmatprep.subr.mxu0 %v634
        %1028 = vmatpush1.msra.mxu0 %v633
        %1029 = vmatprep.subr.mxu0 %v638
        %1030 = vmatpush1.msra.mxu0 %v637
        %1031 = vmatprep.subr.mxu0 %v642
        %1032 = vmatpush1.msra.mxu0 %v641
        %1033 = vmatprep.subr.mxu0 %v646
        %1034 = vmatpush1.msra.mxu0 %v645
        %1035 = vmatprep.subr.mxu0 %v650
        %1036 = vmatpush1.msra.mxu0 %v649
        %1037 = vmatprep.subr.mxu0 %v654
        %1038 = vmatpush1.msra.mxu0 %v653
        %1039 = vmatprep.subr.mxu0 %v658
        %1040 = vmatpush1.msra.mxu0 %v657
        %1041 = vmatprep.subr.mxu0 %v662
        %1042 = vmatpush1.msra.mxu0 %v661
        %1043 = vmatprep.subr.mxu0 %v666
        %1044 = vmatpush1.msra.mxu0 %v665
        %1045 = vmatprep.subr.mxu0 %v670
        %1046 = vmatpush1.msra.mxu0 %v669
        %1047 = vmatprep.subr.mxu0 %v674
        %1048 = vmatpush1.msra.mxu0 %v673
        %1049 = vmatprep.subr.mxu0 %v678
        %1050 = vmatpush1.msra.mxu0 %v677
        %1051 = vmatprep.subr.mxu0 %v682
        %1052 = vmatpush1.msra.mxu0 %v681
        %1053 = vmatprep.subr.mxu0 %v686
        %1054 = vmatpush1.msra.mxu0 %v685
        %1055 = vmatprep.subr.mxu0 %v690
        %1056 = vmatpush1.msra.mxu0 %v689
        %1057 = vmatprep.subr.mxu0 %v694
        %1058 = vmatpush1.msra.mxu0 %v693
        %1059 = vmatprep.subr.mxu0 %v698
        %1060 = vmatpush1.msra.mxu0 %v697
        %1061 = vmatprep.subr.mxu0 %v702
        %1062 = vmatpush1.msra.mxu0 %v701
        %1063 = vmatprep.subr.mxu0 %v706
        %1064 = vmatpush1.msra.mxu0 %v705
        %1065 = vmatprep.subr.mxu0 %v710
        %1066 = vmatpush1.msra.mxu0 %v709
        %1067 = vmatprep.mubr.f32.mxu0 %v580
        %1068 = vmatmul.mubr.f32.gmra.mrb[0].mxu0 %v579
        %v1069 = vpop.f32.mrb[0].mxu0
        %v1070 = vadd.f32 %v852, %v1069
        %v1071 = vpop.f32.mrb[0].mxu0
        %v1072 = vadd.f32 %v856, %v1071
        %1073 = vdwg.mxu0
        %1074 = vmatprep.subr.mxu0 %v714
        %1075 = vmatpush1.msra.mxu0 %v713
        %1076 = vmatprep.subr.mxu0 %v718
        %1077 = vmatpush1.msra.mxu0 %v717
        %1078 = vmatprep.subr.mxu0 %v722
        %1079 = vmatpush1.msra.mxu0 %v721
        %1080 = vmatprep.subr.mxu0 %v726
        %1081 = vmatpush1.msra.mxu0 %v725
        %1082 = vmatprep.subr.mxu0 %v730
        %1083 = vmatpush1.msra.mxu0 %v729
        %1084 = vmatprep.subr.mxu0 %v734
        %1085 = vmatpush1.msra.mxu0 %v733
        %1086 = vmatprep.subr.mxu0 %v738
        %1087 = vmatpush1.msra.mxu0 %v737
        %1088 = vmatprep.subr.mxu0 %v742
        %1089 = vmatpush1.msra.mxu0 %v741
        %1090 = vmatprep.subr.mxu0 %v746
        %1091 = vmatpush1.msra.mxu0 %v745
        %1092 = vmatprep.subr.mxu0 %v750
        %1093 = vmatpush1.msra.mxu0 %v749
        %1094 = vmatprep.subr.mxu0 %v754
        %1095 = vmatpush1.msra.mxu0 %v753
        %1096 = vmatprep.subr.mxu0 %v758
        %1097 = vmatpush1.msra.mxu0 %v757
        %1098 = vmatprep.subr.mxu0 %v762
        %1099 = vmatpush1.msra.mxu0 %v761
        %1100 = vmatprep.subr.mxu0 %v766
        %1101 = vmatpush1.msra.mxu0 %v765
        %1102 = vmatprep.subr.mxu0 %v770
        %1103 = vmatpush1.msra.mxu0 %v769
        %1104 = vmatprep.subr.mxu0 %v774
        %1105 = vmatpush1.msra.mxu0 %v773
        %1106 = vmatprep.subr.mxu0 %v778
        %1107 = vmatpush1.msra.mxu0 %v777
        %1108 = vmatprep.subr.mxu0 %v782
        %1109 = vmatpush1.msra.mxu0 %v781
        %1110 = vmatprep.subr.mxu0 %v786
        %1111 = vmatpush1.msra.mxu0 %v785
        %1112 = vmatprep.subr.mxu0 %v790
        %1113 = vmatpush1.msra.mxu0 %v789
        %1114 = vmatprep.subr.mxu0 %v794
        %1115 = vmatpush1.msra.mxu0 %v793
        %1116 = vmatprep.subr.mxu0 %v798
        %1117 = vmatpush1.msra.mxu0 %v797
        %1118 = vmatprep.subr.mxu0 %v802
        %1119 = vmatpush1.msra.mxu0 %v801
        %1120 = vmatprep.subr.mxu0 %v806
        %1121 = vmatpush1.msra.mxu0 %v805
        %1122 = vmatprep.subr.mxu0 %v810
        %1123 = vmatpush1.msra.mxu0 %v809
        %1124 = vmatprep.subr.mxu0 %v814
        %1125 = vmatpush1.msra.mxu0 %v813
        %1126 = vmatprep.subr.mxu0 %v818
        %1127 = vmatpush1.msra.mxu0 %v817
        %1128 = vmatprep.subr.mxu0 %v822
        %1129 = vmatpush1.msra.mxu0 %v821
        %1130 = vmatprep.subr.mxu0 %v826
        %1131 = vmatpush1.msra.mxu0 %v825
        %1132 = vmatprep.subr.mxu0 %v830
        %1133 = vmatpush1.msra.mxu0 %v829
        %1134 = vmatprep.subr.mxu0 %v834
        %1135 = vmatpush1.msra.mxu0 %v833
        %1136 = vmatprep.subr.mxu0 %v838
        %1137 = vmatpush1.msra.mxu0 %v837
        %1138 = vmatprep.mubr.f32.mxu0 %v582
        %1139 = vmatmul.mubr.f32.gmra.mrb[0].mxu0 %v581
        %v1140 = vpop.f32.mrb[0].mxu0
        %v1141 = vadd.f32 %v1070, %v1140
        %v1142 = vpop.f32.mrb[0].mxu0
        %v1143 = vadd.f32 %v1072, %v1142
        %1144 = vdwg.mxu0
        %v1145 = vmax.f32 %v999, 0.0
        %v1146 = vmax.f32 %v1001, 0.0
        %v1147 = vmax.f32 %v1141, 0.0
        %v1148 = vmax.f32 %v1143, 0.0
        %v1149 = vld [vmem:[#allocation5] sm:$0xff]
        %v1150 = vld [vmem:[#allocation5 + $0x8] sm:$0xff]
        %v1151 = vld [vmem:[#allocation5 + $0x10] sm:$0xff]
        %v1152 = vld [vmem:[#allocation5 + $0x18] sm:$0xff]
        %v1153 = vld [vmem:[#allocation5 + $0x20] sm:$0xff]
        %v1154 = vld [vmem:[#allocation5 + $0x28] sm:$0xff]
        %v1155 = vld [vmem:[#allocation5 + $0x30] sm:$0xff]
        %v1156 = vld [vmem:[#allocation5 + $0x38] sm:$0xff]
        %v1157 = vld [vmem:[#allocation5 + $0x40] sm:$0xff]
        %v1158 = vld [vmem:[#allocation5 + $0x48] sm:$0xff]
        %v1159 = vld [vmem:[#allocation5 + $0x50] sm:$0xff]
        %v1160 = vld [vmem:[#allocation5 + $0x58] sm:$0xff]
        %v1161 = vld [vmem:[#allocation5 + $0x60] sm:$0xff]
        %v1162 = vld [vmem:[#allocation5 + $0x68] sm:$0xff]
        %v1163 = vld [vmem:[#allocation5 + $0x70] sm:$0xff]
        %v1164 = vld [vmem:[#allocation5 + $0x78] sm:$0xff]
        %v1165 = vld [vmem:[#allocation5 + $0x80] sm:$0xff]
        %v1166 = vld [vmem:[#allocation5 + $0x88] sm:$0xff]
        %v1167 = vld [vmem:[#allocation5 + $0x90] sm:$0xff]
        %v1168 = vld [vmem:[#allocation5 + $0x98] sm:$0xff]
        %v1169 = vld [vmem:[#allocation5 + $0xa0] sm:$0xff]
        %v1170 = vld [vmem:[#allocation5 + $0xa8] sm:$0xff]
        %v1171 = vld [vmem:[#allocation5 + $0xb0] sm:$0xff]
        %v1172 = vld [vmem:[#allocation5 + $0xb8] sm:$0xff]
        %v1173 = vld [vmem:[#allocation5 + $0xc0] sm:$0xff]
        %v1174 = vld [vmem:[#allocation5 + $0xc8] sm:$0xff]
        %v1175 = vld [vmem:[#allocation5 + $0xd0] sm:$0xff]
        %v1176 = vld [vmem:[#allocation5 + $0xd8] sm:$0xff]
        %v1177 = vld [vmem:[#allocation5 + $0xe0] sm:$0xff]
        %v1178 = vld [vmem:[#allocation5 + $0xe8] sm:$0xff]
        %v1179 = vld [vmem:[#allocation5 + $0xf0] sm:$0xff]
        %v1180 = vld [vmem:[#allocation5 + $0xf8] sm:$0xff]
        %v1181 = vld [vmem:[#allocation5 + $0x100] sm:$0xff]
        %v1182 = vld [vmem:[#allocation5 + $0x108] sm:$0xff]
        %v1183 = vld [vmem:[#allocation5 + $0x110] sm:$0xff]
        %v1184 = vld [vmem:[#allocation5 + $0x118] sm:$0xff]
        %v1185 = vld [vmem:[#allocation5 + $0x120] sm:$0xff]
        %v1186 = vld [vmem:[#allocation5 + $0x128] sm:$0xff]
        %v1187 = vld [vmem:[#allocation5 + $0x130] sm:$0xff]
        %v1188 = vld [vmem:[#allocation5 + $0x138] sm:$0xff]
        %v1189 = vld [vmem:[#allocation5 + $0x140] sm:$0xff]
        %v1190 = vld [vmem:[#allocation5 + $0x148] sm:$0xff]
        %v1191 = vld [vmem:[#allocation5 + $0x150] sm:$0xff]
        %v1192 = vld [vmem:[#allocation5 + $0x158] sm:$0xff]
        %v1193 = vld [vmem:[#allocation5 + $0x160] sm:$0xff]
        %v1194 = vld [vmem:[#allocation5 + $0x168] sm:$0xff]
        %v1195 = vld [vmem:[#allocation5 + $0x170] sm:$0xff]
        %v1196 = vld [vmem:[#allocation5 + $0x178] sm:$0xff]
        %v1197 = vld [vmem:[#allocation5 + $0x180] sm:$0xff]
        %v1198 = vld [vmem:[#allocation5 + $0x188] sm:$0xff]
        %v1199 = vld [vmem:[#allocation5 + $0x190] sm:$0xff]
        %v1200 = vld [vmem:[#allocation5 + $0x198] sm:$0xff]
        %v1201 = vld [vmem:[#allocation5 + $0x1a0] sm:$0xff]
        %v1202 = vld [vmem:[#allocation5 + $0x1a8] sm:$0xff]
        %v1203 = vld [vmem:[#allocation5 + $0x1b0] sm:$0xff]
        %v1204 = vld [vmem:[#allocation5 + $0x1b8] sm:$0xff]
        %v1205 = vld [vmem:[#allocation5 + $0x1c0] sm:$0xff]
        %v1206 = vld [vmem:[#allocation5 + $0x1c8] sm:$0xff]
        %v1207 = vld [vmem:[#allocation5 + $0x1d0] sm:$0xff]
        %v1208 = vld [vmem:[#allocation5 + $0x1d8] sm:$0xff]
        %v1209 = vld [vmem:[#allocation5 + $0x1e0] sm:$0xff]
        %v1210 = vld [vmem:[#allocation5 + $0x1e8] sm:$0xff]
        %v1211 = vld [vmem:[#allocation5 + $0x1f0] sm:$0xff]
        %v1212 = vld [vmem:[#allocation5 + $0x1f8] sm:$0xff]
        %v1213 = vld [vmem:[#allocation5 + $0x200] sm:$0xff]
        %v1214 = vld [vmem:[#allocation5 + $0x208] sm:$0xff]
        %v1215 = vld [vmem:[#allocation5 + $0x210] sm:$0xff]
        %v1216 = vld [vmem:[#allocation5 + $0x218] sm:$0xff]
        %v1217 = vld [vmem:[#allocation5 + $0x220] sm:$0xff]
        %v1218 = vld [vmem:[#allocation5 + $0x228] sm:$0xff]
        %v1219 = vld [vmem:[#allocation5 + $0x230] sm:$0xff]
        %v1220 = vld [vmem:[#allocation5 + $0x238] sm:$0xff]
        %v1221 = vld [vmem:[#allocation5 + $0x240] sm:$0xff]
        %v1222 = vld [vmem:[#allocation5 + $0x248] sm:$0xff]
        %v1223 = vld [vmem:[#allocation5 + $0x250] sm:$0xff]
        %v1224 = vld [vmem:[#allocation5 + $0x258] sm:$0xff]
        %v1225 = vld [vmem:[#allocation5 + $0x260] sm:$0xff]
        %v1226 = vld [vmem:[#allocation5 + $0x268] sm:$0xff]
        %v1227 = vld [vmem:[#allocation5 + $0x270] sm:$0xff]
        %v1228 = vld [vmem:[#allocation5 + $0x278] sm:$0xff]
        %v1229 = vld [vmem:[#allocation5 + $0x280] sm:$0xff]
        %v1230 = vld [vmem:[#allocation5 + $0x288] sm:$0xff]
        %v1231 = vld [vmem:[#allocation5 + $0x290] sm:$0xff]
        %v1232 = vld [vmem:[#allocation5 + $0x298] sm:$0xff]
        %v1233 = vld [vmem:[#allocation5 + $0x2a0] sm:$0xff]
        %v1234 = vld [vmem:[#allocation5 + $0x2a8] sm:$0xff]
        %v1235 = vld [vmem:[#allocation5 + $0x2b0] sm:$0xff]
        %v1236 = vld [vmem:[#allocation5 + $0x2b8] sm:$0xff]
        %v1237 = vld [vmem:[#allocation5 + $0x2c0] sm:$0xff]
        %v1238 = vld [vmem:[#allocation5 + $0x2c8] sm:$0xff]
        %v1239 = vld [vmem:[#allocation5 + $0x2d0] sm:$0xff]
        %v1240 = vld [vmem:[#allocation5 + $0x2d8] sm:$0xff]
        %v1241 = vld [vmem:[#allocation5 + $0x2e0] sm:$0xff]
        %v1242 = vld [vmem:[#allocation5 + $0x2e8] sm:$0xff]
        %v1243 = vld [vmem:[#allocation5 + $0x2f0] sm:$0xff]
        %v1244 = vld [vmem:[#allocation5 + $0x2f8] sm:$0xff]
        %v1245 = vld [vmem:[#allocation5 + $0x300] sm:$0xff]
        %v1246 = vld [vmem:[#allocation5 + $0x308] sm:$0xff]
        %v1247 = vld [vmem:[#allocation5 + $0x310] sm:$0xff]
        %v1248 = vld [vmem:[#allocation5 + $0x318] sm:$0xff]
        %v1249 = vld [vmem:[#allocation5 + $0x320] sm:$0xff]
        %v1250 = vld [vmem:[#allocation5 + $0x328] sm:$0xff]
        %v1251 = vld [vmem:[#allocation5 + $0x330] sm:$0xff]
        %v1252 = vld [vmem:[#allocation5 + $0x338] sm:$0xff]
        %v1253 = vld [vmem:[#allocation5 + $0x340] sm:$0xff]
        %v1254 = vld [vmem:[#allocation5 + $0x348] sm:$0xff]
        %v1255 = vld [vmem:[#allocation5 + $0x350] sm:$0xff]
        %v1256 = vld [vmem:[#allocation5 + $0x358] sm:$0xff]
        %v1257 = vld [vmem:[#allocation5 + $0x360] sm:$0xff]
        %v1258 = vld [vmem:[#allocation5 + $0x368] sm:$0xff]
        %v1259 = vld [vmem:[#allocation5 + $0x370] sm:$0xff]
        %v1260 = vld [vmem:[#allocation5 + $0x378] sm:$0xff]
        %v1261 = vld [vmem:[#allocation5 + $0x380] sm:$0xff]
        %v1262 = vld [vmem:[#allocation5 + $0x388] sm:$0xff]
        %v1263 = vld [vmem:[#allocation5 + $0x390] sm:$0xff]
        %v1264 = vld [vmem:[#allocation5 + $0x398] sm:$0xff]
        %v1265 = vld [vmem:[#allocation5 + $0x3a0] sm:$0xff]
        %v1266 = vld [vmem:[#allocation5 + $0x3a8] sm:$0xff]
        %v1267 = vld [vmem:[#allocation5 + $0x3b0] sm:$0xff]
        %v1268 = vld [vmem:[#allocation5 + $0x3b8] sm:$0xff]
        %v1269 = vld [vmem:[#allocation5 + $0x3c0] sm:$0xff]
        %v1270 = vld [vmem:[#allocation5 + $0x3c8] sm:$0xff]
        %v1271 = vld [vmem:[#allocation5 + $0x3d0] sm:$0xff]
        %v1272 = vld [vmem:[#allocation5 + $0x3d8] sm:$0xff]
        %v1273 = vld [vmem:[#allocation5 + $0x3e0] sm:$0xff]
        %v1274 = vld [vmem:[#allocation5 + $0x3e8] sm:$0xff]
        %v1275 = vld [vmem:[#allocation5 + $0x3f0] sm:$0xff]
        %v1276 = vld [vmem:[#allocation5 + $0x3f8] sm:$0xff]
        %v1277 = vld [vmem:[#allocation5 + $0x400] sm:$0xff]
        %v1278 = vld [vmem:[#allocation5 + $0x408] sm:$0xff]
        %v1279 = vld [vmem:[#allocation5 + $0x410] sm:$0xff]
        %v1280 = vld [vmem:[#allocation5 + $0x418] sm:$0xff]
        %v1281 = vld [vmem:[#allocation5 + $0x420] sm:$0xff]
        %v1282 = vld [vmem:[#allocation5 + $0x428] sm:$0xff]
        %v1283 = vld [vmem:[#allocation5 + $0x430] sm:$0xff]
        %v1284 = vld [vmem:[#allocation5 + $0x438] sm:$0xff]
        %v1285 = vld [vmem:[#allocation5 + $0x440] sm:$0xff]
        %v1286 = vld [vmem:[#allocation5 + $0x448] sm:$0xff]
        %v1287 = vld [vmem:[#allocation5 + $0x450] sm:$0xff]
        %v1288 = vld [vmem:[#allocation5 + $0x458] sm:$0xff]
        %v1289 = vld [vmem:[#allocation5 + $0x460] sm:$0xff]
        %v1290 = vld [vmem:[#allocation5 + $0x468] sm:$0xff]
        %v1291 = vld [vmem:[#allocation5 + $0x470] sm:$0xff]
        %v1292 = vld [vmem:[#allocation5 + $0x478] sm:$0xff]
        %v1293 = vld [vmem:[#allocation5 + $0x480] sm:$0xff]
        %v1294 = vld [vmem:[#allocation5 + $0x488] sm:$0xff]
        %v1295 = vld [vmem:[#allocation5 + $0x490] sm:$0xff]
        %v1296 = vld [vmem:[#allocation5 + $0x498] sm:$0xff]
        %v1297 = vld [vmem:[#allocation5 + $0x4a0] sm:$0xff]
        %v1298 = vld [vmem:[#allocation5 + $0x4a8] sm:$0xff]
        %v1299 = vld [vmem:[#allocation5 + $0x4b0] sm:$0xff]
        %v1300 = vld [vmem:[#allocation5 + $0x4b8] sm:$0xff]
        %v1301 = vld [vmem:[#allocation5 + $0x4c0] sm:$0xff]
        %v1302 = vld [vmem:[#allocation5 + $0x4c8] sm:$0xff]
        %v1303 = vld [vmem:[#allocation5 + $0x4d0] sm:$0xff]
        %v1304 = vld [vmem:[#allocation5 + $0x4d8] sm:$0xff]
        %v1305 = vld [vmem:[#allocation5 + $0x4e0] sm:$0xff]
        %v1306 = vld [vmem:[#allocation5 + $0x4e8] sm:$0xff]
        %v1307 = vld [vmem:[#allocation5 + $0x4f0] sm:$0xff]
        %v1308 = vld [vmem:[#allocation5 + $0x4f8] sm:$0xff]
        %v1309 = vld [vmem:[#allocation5 + $0x500] sm:$0xff]
        %v1310 = vld [vmem:[#allocation5 + $0x508] sm:$0xff]
        %v1311 = vld [vmem:[#allocation5 + $0x510] sm:$0xff]
        %v1312 = vld [vmem:[#allocation5 + $0x518] sm:$0xff]
        %v1313 = vld [vmem:[#allocation5 + $0x520] sm:$0xff]
        %v1314 = vld [vmem:[#allocation5 + $0x528] sm:$0xff]
        %v1315 = vld [vmem:[#allocation5 + $0x530] sm:$0xff]
        %v1316 = vld [vmem:[#allocation5 + $0x538] sm:$0xff]
        %v1317 = vld [vmem:[#allocation5 + $0x540] sm:$0xff]
        %v1318 = vld [vmem:[#allocation5 + $0x548] sm:$0xff]
        %v1319 = vld [vmem:[#allocation5 + $0x550] sm:$0xff]
        %v1320 = vld [vmem:[#allocation5 + $0x558] sm:$0xff]
        %v1321 = vld [vmem:[#allocation5 + $0x560] sm:$0xff]
        %v1322 = vld [vmem:[#allocation5 + $0x568] sm:$0xff]
        %v1323 = vld [vmem:[#allocation5 + $0x570] sm:$0xff]
        %v1324 = vld [vmem:[#allocation5 + $0x578] sm:$0xff]
        %v1325 = vld [vmem:[#allocation5 + $0x580] sm:$0xff]
        %v1326 = vld [vmem:[#allocation5 + $0x588] sm:$0xff]
        %v1327 = vld [vmem:[#allocation5 + $0x590] sm:$0xff]
        %v1328 = vld [vmem:[#allocation5 + $0x598] sm:$0xff]
        %v1329 = vld [vmem:[#allocation5 + $0x5a0] sm:$0xff]
        %v1330 = vld [vmem:[#allocation5 + $0x5a8] sm:$0xff]
        %v1331 = vld [vmem:[#allocation5 + $0x5b0] sm:$0xff]
        %v1332 = vld [vmem:[#allocation5 + $0x5b8] sm:$0xff]
        %v1333 = vld [vmem:[#allocation5 + $0x5c0] sm:$0xff]
        %v1334 = vld [vmem:[#allocation5 + $0x5c8] sm:$0xff]
        %v1335 = vld [vmem:[#allocation5 + $0x5d0] sm:$0xff]
        %v1336 = vld [vmem:[#allocation5 + $0x5d8] sm:$0xff]
        %v1337 = vld [vmem:[#allocation5 + $0x5e0] sm:$0xff]
        %v1338 = vld [vmem:[#allocation5 + $0x5e8] sm:$0xff]
        %v1339 = vld [vmem:[#allocation5 + $0x5f0] sm:$0xff]
        %v1340 = vld [vmem:[#allocation5 + $0x5f8] sm:$0xff]
        %v1341 = vld [vmem:[#allocation5 + $0x600] sm:$0xff]
        %v1342 = vld [vmem:[#allocation5 + $0x608] sm:$0xff]
        %v1343 = vld [vmem:[#allocation5 + $0x610] sm:$0xff]
        %v1344 = vld [vmem:[#allocation5 + $0x618] sm:$0xff]
        %v1345 = vld [vmem:[#allocation5 + $0x620] sm:$0xff]
        %v1346 = vld [vmem:[#allocation5 + $0x628] sm:$0xff]
        %v1347 = vld [vmem:[#allocation5 + $0x630] sm:$0xff]
        %v1348 = vld [vmem:[#allocation5 + $0x638] sm:$0xff]
        %v1349 = vld [vmem:[#allocation5 + $0x640] sm:$0xff]
        %v1350 = vld [vmem:[#allocation5 + $0x648] sm:$0xff]
        %v1351 = vld [vmem:[#allocation5 + $0x650] sm:$0xff]
        %v1352 = vld [vmem:[#allocation5 + $0x658] sm:$0xff]
        %v1353 = vld [vmem:[#allocation5 + $0x660] sm:$0xff]
        %v1354 = vld [vmem:[#allocation5 + $0x668] sm:$0xff]
        %v1355 = vld [vmem:[#allocation5 + $0x670] sm:$0xff]
        %v1356 = vld [vmem:[#allocation5 + $0x678] sm:$0xff]
        %v1357 = vld [vmem:[#allocation5 + $0x680] sm:$0xff]
        %v1358 = vld [vmem:[#allocation5 + $0x688] sm:$0xff]
        %v1359 = vld [vmem:[#allocation5 + $0x690] sm:$0xff]
        %v1360 = vld [vmem:[#allocation5 + $0x698] sm:$0xff]
        %v1361 = vld [vmem:[#allocation5 + $0x6a0] sm:$0xff]
        %v1362 = vld [vmem:[#allocation5 + $0x6a8] sm:$0xff]
        %v1363 = vld [vmem:[#allocation5 + $0x6b0] sm:$0xff]
        %v1364 = vld [vmem:[#allocation5 + $0x6b8] sm:$0xff]
        %v1365 = vld [vmem:[#allocation5 + $0x6c0] sm:$0xff]
        %v1366 = vld [vmem:[#allocation5 + $0x6c8] sm:$0xff]
        %v1367 = vld [vmem:[#allocation5 + $0x6d0] sm:$0xff]
        %v1368 = vld [vmem:[#allocation5 + $0x6d8] sm:$0xff]
        %v1369 = vld [vmem:[#allocation5 + $0x6e0] sm:$0xff]
        %v1370 = vld [vmem:[#allocation5 + $0x6e8] sm:$0xff]
        %v1371 = vld [vmem:[#allocation5 + $0x6f0] sm:$0xff]
        %v1372 = vld [vmem:[#allocation5 + $0x6f8] sm:$0xff]
        %v1373 = vld [vmem:[#allocation5 + $0x700] sm:$0xff]
        %v1374 = vld [vmem:[#allocation5 + $0x708] sm:$0xff]
        %v1375 = vld [vmem:[#allocation5 + $0x710] sm:$0xff]
        %v1376 = vld [vmem:[#allocation5 + $0x718] sm:$0xff]
        %v1377 = vld [vmem:[#allocation5 + $0x720] sm:$0xff]
        %v1378 = vld [vmem:[#allocation5 + $0x728] sm:$0xff]
        %v1379 = vld [vmem:[#allocation5 + $0x730] sm:$0xff]
        %v1380 = vld [vmem:[#allocation5 + $0x738] sm:$0xff]
        %v1381 = vld [vmem:[#allocation5 + $0x740] sm:$0xff]
        %v1382 = vld [vmem:[#allocation5 + $0x748] sm:$0xff]
        %v1383 = vld [vmem:[#allocation5 + $0x750] sm:$0xff]
        %v1384 = vld [vmem:[#allocation5 + $0x758] sm:$0xff]
        %v1385 = vld [vmem:[#allocation5 + $0x760] sm:$0xff]
        %v1386 = vld [vmem:[#allocation5 + $0x768] sm:$0xff]
        %v1387 = vld [vmem:[#allocation5 + $0x770] sm:$0xff]
        %v1388 = vld [vmem:[#allocation5 + $0x778] sm:$0xff]
        %v1389 = vld [vmem:[#allocation5 + $0x780] sm:$0xff]
        %v1390 = vld [vmem:[#allocation5 + $0x788] sm:$0xff]
        %v1391 = vld [vmem:[#allocation5 + $0x790] sm:$0xff]
        %v1392 = vld [vmem:[#allocation5 + $0x798] sm:$0xff]
        %v1393 = vld [vmem:[#allocation5 + $0x7a0] sm:$0xff]
        %v1394 = vld [vmem:[#allocation5 + $0x7a8] sm:$0xff]
        %v1395 = vld [vmem:[#allocation5 + $0x7b0] sm:$0xff]
        %v1396 = vld [vmem:[#allocation5 + $0x7b8] sm:$0xff]
        %v1397 = vld [vmem:[#allocation5 + $0x7c0] sm:$0xff]
        %v1398 = vld [vmem:[#allocation5 + $0x7c8] sm:$0xff]
        %v1399 = vld [vmem:[#allocation5 + $0x7d0] sm:$0xff]
        %v1400 = vld [vmem:[#allocation5 + $0x7d8] sm:$0xff]
        %v1401 = vld [vmem:[#allocation5 + $0x7e0] sm:$0xff]
        %v1402 = vld [vmem:[#allocation5 + $0x7e8] sm:$0xff]
        %v1403 = vld [vmem:[#allocation5 + $0x7f0] sm:$0xff]
        %v1404 = vld [vmem:[#allocation5 + $0x7f8] sm:$0xff]
        %v1405 = vld [vmem:[%s386] sm:$0xff]
        %v1406 = vld [vmem:[#allocation7] sm:$0xff]
        %v1407 = vld [vmem:[#allocation7 + $0x8] sm:$0xff]
        %v1408 = vld [vmem:[#allocation7 + $0x10] sm:$0xff]
        %v1409 = vld [vmem:[#allocation7 + $0x18] sm:$0xff]
        %v1410 = vld [vmem:[#allocation7 + $0x20] sm:$0xff]
        %v1411 = vld [vmem:[#allocation7 + $0x28] sm:$0xff]
        %v1412 = vld [vmem:[#allocation7 + $0x30] sm:$0xff]
        %v1413 = vld [vmem:[#allocation7 + $0x38] sm:$0xff]
        %v1414 = vld [vmem:[#allocation7 + $0x40] sm:$0xff]
        %v1415 = vld [vmem:[#allocation7 + $0x48] sm:$0xff]
        %v1416 = vld [vmem:[#allocation7 + $0x50] sm:$0xff]
        %v1417 = vld [vmem:[#allocation7 + $0x58] sm:$0xff]
        %v1418 = vld [vmem:[#allocation7 + $0x60] sm:$0xff]
        %v1419 = vld [vmem:[#allocation7 + $0x68] sm:$0xff]
        %v1420 = vld [vmem:[#allocation7 + $0x70] sm:$0xff]
        %v1421 = vld [vmem:[#allocation7 + $0x78] sm:$0xff]
        %vm1422 = vcmask 261120
        %v1424 = vsel %vm1422, %v1405, 0
        %1426 = vmatprep.subr.mxu0 %v1407
        %1427 = vmatpush1.msra.mxu0 %v1406
        %1428 = vmatprep.subr.mxu0 %v1411
        %1429 = vmatpush1.msra.mxu0 %v1410
        %1430 = vmatprep.subr.mxu0 %v1415
        %1431 = vmatpush1.msra.mxu0 %v1414
        %1432 = vmatprep.subr.mxu0 %v1419
        %1433 = vmatpush1.msra.mxu0 %v1418
        %1434 = vmatprep.subr.mxu0 0.0
        %1435 = vmatpush1.msra.mxu0 0.0
        %1436 = vmatprep.subr.mxu0 0.0
        %1437 = vmatpush1.msra.mxu0 0.0
        %1438 = vmatprep.subr.mxu0 0.0
        %1439 = vmatpush1.msra.mxu0 0.0
        %1440 = vmatprep.subr.mxu0 0.0
        %1441 = vmatpush1.msra.mxu0 0.0
        %1442 = vmatprep.subr.mxu0 0.0
        %1443 = vmatpush1.msra.mxu0 0.0
        %1444 = vmatprep.subr.mxu0 0.0
        %1445 = vmatpush1.msra.mxu0 0.0
        %1446 = vmatprep.subr.mxu0 0.0
        %1447 = vmatpush1.msra.mxu0 0.0
        %1448 = vmatprep.subr.mxu0 0.0
        %1449 = vmatpush1.msra.mxu0 0.0
        %1450 = vmatprep.subr.mxu0 0.0
        %1451 = vmatpush1.msra.mxu0 0.0
        %1452 = vmatprep.subr.mxu0 0.0
        %1453 = vmatpush1.msra.mxu0 0.0
        %1454 = vmatprep.subr.mxu0 0.0
        %1455 = vmatpush1.msra.mxu0 0.0
        %1456 = vmatprep.subr.mxu0 0.0
        %1457 = vmatpush1.msra.mxu0 0.0
        %1458 = vmatprep.subr.mxu0 0.0
        %1459 = vmatpush1.msra.mxu0 0.0
        %1460 = vmatprep.subr.mxu0 0.0
        %1461 = vmatpush1.msra.mxu0 0.0
        %1462 = vmatprep.subr.mxu0 0.0
        %1463 = vmatpush1.msra.mxu0 0.0
        %1464 = vmatprep.subr.mxu0 0.0
        %1465 = vmatpush1.msra.mxu0 0.0
        %1466 = vmatprep.subr.mxu0 0.0
        %1467 = vmatpush1.msra.mxu0 0.0
        %1468 = vmatprep.subr.mxu0 0.0
        %1469 = vmatpush1.msra.mxu0 0.0
        %1470 = vmatprep.subr.mxu0 0.0
        %1471 = vmatpush1.msra.mxu0 0.0
        %1472 = vmatprep.subr.mxu0 0.0
        %1473 = vmatpush1.msra.mxu0 0.0
        %1474 = vmatprep.subr.mxu0 0.0
        %1475 = vmatpush1.msra.mxu0 0.0
        %1476 = vmatprep.subr.mxu0 0.0
        %1477 = vmatpush1.msra.mxu0 0.0
        %1478 = vmatprep.subr.mxu0 0.0
        %1479 = vmatpush1.msra.mxu0 0.0
        %1480 = vmatprep.subr.mxu0 0.0
        %1481 = vmatpush1.msra.mxu0 0.0
        %1482 = vmatprep.subr.mxu0 0.0
        %1483 = vmatpush1.msra.mxu0 0.0
        %1484 = vmatprep.subr.mxu0 0.0
        %1485 = vmatpush1.msra.mxu0 0.0
        %1486 = vmatprep.subr.mxu0 0.0
        %1487 = vmatpush1.msra.mxu0 0.0
        %1488 = vmatprep.subr.mxu0 0.0
        %1489 = vmatpush1.msra.mxu0 0.0
        %1490 = vmatprep.mubr.f32.mxu0 0.0
        %1491 = vmatmul.mubr.f32.gmra.mrb[0].mxu0 %v1424
        %v1492 = vpop.f32.mrb[0].mxu0
        %v1493 = vadd.f32 0.0, %v1492
        %v1494 = vpop.f32.mrb[0].mxu0
        %v1495 = vadd.f32 0.0, %v1494
        %1496 = vdwg.mxu0
        %1497 = vmatprep.subr.mxu0 %v1409
        %1498 = vmatpush1.msra.mxu0 %v1408
        %1499 = vmatprep.subr.mxu0 %v1413
        %1500 = vmatpush1.msra.mxu0 %v1412
        %1501 = vmatprep.subr.mxu0 %v1417
        %1502 = vmatpush1.msra.mxu0 %v1416
        %1503 = vmatprep.subr.mxu0 %v1421
        %1504 = vmatpush1.msra.mxu0 %v1420
        %1505 = vmatprep.subr.mxu0 0.0
        %1506 = vmatpush1.msra.mxu0 0.0
        %1507 = vmatprep.subr.mxu0 0.0
        %1508 = vmatpush1.msra.mxu0 0.0
        %1509 = vmatprep.subr.mxu0 0.0
        %1510 = vmatpush1.msra.mxu0 0.0
        %1511 = vmatprep.subr.mxu0 0.0
        %1512 = vmatpush1.msra.mxu0 0.0
        %1513 = vmatprep.subr.mxu0 0.0
        %1514 = vmatpush1.msra.mxu0 0.0
        %1515 = vmatprep.subr.mxu0 0.0
        %1516 = vmatpush1.msra.mxu0 0.0
        %1517 = vmatprep.subr.mxu0 0.0
        %1518 = vmatpush1.msra.mxu0 0.0
        %1519 = vmatprep.subr.mxu0 0.0
        %1520 = vmatpush1.msra.mxu0 0.0
        %1521 = vmatprep.subr.mxu0 0.0
        %1522 = vmatpush1.msra.mxu0 0.0
        %1523 = vmatprep.subr.mxu0 0.0
        %1524 = vmatpush1.msra.mxu0 0.0
        %1525 = vmatprep.subr.mxu0 0.0
        %1526 = vmatpush1.msra.mxu0 0.0
        %1527 = vmatprep.subr.mxu0 0.0
        %1528 = vmatpush1.msra.mxu0 0.0
        %1529 = vmatprep.subr.mxu0 0.0
        %1530 = vmatpush1.msra.mxu0 0.0
        %1531 = vmatprep.subr.mxu0 0.0
        %1532 = vmatpush1.msra.mxu0 0.0
        %1533 = vmatprep.subr.mxu0 0.0
        %1534 = vmatpush1.msra.mxu0 0.0
        %1535 = vmatprep.subr.mxu0 0.0
        %1536 = vmatpush1.msra.mxu0 0.0
        %1537 = vmatprep.subr.mxu0 0.0
        %1538 = vmatpush1.msra.mxu0 0.0
        %1539 = vmatprep.subr.mxu0 0.0
        %1540 = vmatpush1.msra.mxu0 0.0
        %1541 = vmatprep.subr.mxu0 0.0
        %1542 = vmatpush1.msra.mxu0 0.0
        %1543 = vmatprep.subr.mxu0 0.0
        %1544 = vmatpush1.msra.mxu0 0.0
        %1545 = vmatprep.subr.mxu0 0.0
        %1546 = vmatpush1.msra.mxu0 0.0
        %1547 = vmatprep.subr.mxu0 0.0
        %1548 = vmatpush1.msra.mxu0 0.0
        %1549 = vmatprep.subr.mxu0 0.0
        %1550 = vmatpush1.msra.mxu0 0.0
        %1551 = vmatprep.subr.mxu0 0.0
        %1552 = vmatpush1.msra.mxu0 0.0
        %1553 = vmatprep.subr.mxu0 0.0
        %1554 = vmatpush1.msra.mxu0 0.0
        %1555 = vmatprep.subr.mxu0 0.0
        %1556 = vmatpush1.msra.mxu0 0.0
        %1557 = vmatprep.subr.mxu0 0.0
        %1558 = vmatpush1.msra.mxu0 0.0
        %1559 = vmatprep.subr.mxu0 0.0
        %1560 = vmatpush1.msra.mxu0 0.0
        %1561 = vmatprep.mubr.f32.mxu0 0.0
        %1562 = vmatmul.mubr.f32.gmra.mrb[0].mxu0 %v1424
        %v1563 = vpop.f32.mrb[0].mxu0
        %v1564 = vadd.f32 0.0, %v1563
        %v1565 = vpop.f32.mrb[0].mxu0
        %v1566 = vadd.f32 0.0, %v1565
        %1567 = vdwg.mxu0
        %1568 = vmatprep.subr.mxu0 %v1150
        %1569 = vmatpush1.msra.mxu0 %v1149
        %1570 = vmatprep.subr.mxu0 %v1154
        %1571 = vmatpush1.msra.mxu0 %v1153
        %1572 = vmatprep.subr.mxu0 %v1158
        %1573 = vmatpush1.msra.mxu0 %v1157
        %1574 = vmatprep.subr.mxu0 %v1162
        %1575 = vmatpush1.msra.mxu0 %v1161
        %1576 = vmatprep.subr.mxu0 %v1166
        %1577 = vmatpush1.msra.mxu0 %v1165
        %1578 = vmatprep.subr.mxu0 %v1170
        %1579 = vmatpush1.msra.mxu0 %v1169
        %1580 = vmatprep.subr.mxu0 %v1174
        %1581 = vmatpush1.msra.mxu0 %v1173
        %1582 = vmatprep.subr.mxu0 %v1178
        %1583 = vmatpush1.msra.mxu0 %v1177
        %1584 = vmatprep.subr.mxu0 %v1182
        %1585 = vmatpush1.msra.mxu0 %v1181
        %1586 = vmatprep.subr.mxu0 %v1186
        %1587 = vmatpush1.msra.mxu0 %v1185
        %1588 = vmatprep.subr.mxu0 %v1190
        %1589 = vmatpush1.msra.mxu0 %v1189
        %1590 = vmatprep.subr.mxu0 %v1194
        %1591 = vmatpush1.msra.mxu0 %v1193
        %1592 = vmatprep.subr.mxu0 %v1198
        %1593 = vmatpush1.msra.mxu0 %v1197
        %1594 = vmatprep.subr.mxu0 %v1202
        %1595 = vmatpush1.msra.mxu0 %v1201
        %1596 = vmatprep.subr.mxu0 %v1206
        %1597 = vmatpush1.msra.mxu0 %v1205
        %1598 = vmatprep.subr.mxu0 %v1210
        %1599 = vmatpush1.msra.mxu0 %v1209
        %1600 = vmatprep.subr.mxu0 %v1214
        %1601 = vmatpush1.msra.mxu0 %v1213
        %1602 = vmatprep.subr.mxu0 %v1218
        %1603 = vmatpush1.msra.mxu0 %v1217
        %1604 = vmatprep.subr.mxu0 %v1222
        %1605 = vmatpush1.msra.mxu0 %v1221
        %1606 = vmatprep.subr.mxu0 %v1226
        %1607 = vmatpush1.msra.mxu0 %v1225
        %1608 = vmatprep.subr.mxu0 %v1230
        %1609 = vmatpush1.msra.mxu0 %v1229
        %1610 = vmatprep.subr.mxu0 %v1234
        %1611 = vmatpush1.msra.mxu0 %v1233
        %1612 = vmatprep.subr.mxu0 %v1238
        %1613 = vmatpush1.msra.mxu0 %v1237
        %1614 = vmatprep.subr.mxu0 %v1242
        %1615 = vmatpush1.msra.mxu0 %v1241
        %1616 = vmatprep.subr.mxu0 %v1246
        %1617 = vmatpush1.msra.mxu0 %v1245
        %1618 = vmatprep.subr.mxu0 %v1250
        %1619 = vmatpush1.msra.mxu0 %v1249
        %1620 = vmatprep.subr.mxu0 %v1254
        %1621 = vmatpush1.msra.mxu0 %v1253
        %1622 = vmatprep.subr.mxu0 %v1258
        %1623 = vmatpush1.msra.mxu0 %v1257
        %1624 = vmatprep.subr.mxu0 %v1262
        %1625 = vmatpush1.msra.mxu0 %v1261
        %1626 = vmatprep.subr.mxu0 %v1266
        %1627 = vmatpush1.msra.mxu0 %v1265
        %1628 = vmatprep.subr.mxu0 %v1270
        %1629 = vmatpush1.msra.mxu0 %v1269
        %1630 = vmatprep.subr.mxu0 %v1274
        %1631 = vmatpush1.msra.mxu0 %v1273
        %1632 = vmatprep.mubr.f32.mxu0 %v1146
        %1633 = vmatmul.mubr.f32.gmra.mrb[0].mxu0 %v1145
        %v1634 = vpop.f32.mrb[0].mxu0
        %v1635 = vadd.f32 %v1493, %v1634
        %v1636 = vpop.f32.mrb[0].mxu0
        %v1637 = vadd.f32 %v1495, %v1636
        %1638 = vdwg.mxu0
        %1639 = vmatprep.subr.mxu0 %v1278
        %1640 = vmatpush1.msra.mxu0 %v1277
        %1641 = vmatprep.subr.mxu0 %v1282
        %1642 = vmatpush1.msra.mxu0 %v1281
        %1643 = vmatprep.subr.mxu0 %v1286
        %1644 = vmatpush1.msra.mxu0 %v1285
        %1645 = vmatprep.subr.mxu0 %v1290
        %1646 = vmatpush1.msra.mxu0 %v1289
        %1647 = vmatprep.subr.mxu0 %v1294
        %1648 = vmatpush1.msra.mxu0 %v1293
        %1649 = vmatprep.subr.mxu0 %v1298
        %1650 = vmatpush1.msra.mxu0 %v1297
        %1651 = vmatprep.subr.mxu0 %v1302
        %1652 = vmatpush1.msra.mxu0 %v1301
        %1653 = vmatprep.subr.mxu0 %v1306
        %1654 = vmatpush1.msra.mxu0 %v1305
        %1655 = vmatprep.subr.mxu0 %v1310
        %1656 = vmatpush1.msra.mxu0 %v1309
        %1657 = vmatprep.subr.mxu0 %v1314
        %1658 = vmatpush1.msra.mxu0 %v1313
        %1659 = vmatprep.subr.mxu0 %v1318
        %1660 = vmatpush1.msra.mxu0 %v1317
        %1661 = vmatprep.subr.mxu0 %v1322
        %1662 = vmatpush1.msra.mxu0 %v1321
        %1663 = vmatprep.subr.mxu0 %v1326
        %1664 = vmatpush1.msra.mxu0 %v1325
        %1665 = vmatprep.subr.mxu0 %v1330
        %1666 = vmatpush1.msra.mxu0 %v1329
        %1667 = vmatprep.subr.mxu0 %v1334
        %1668 = vmatpush1.msra.mxu0 %v1333
        %1669 = vmatprep.subr.mxu0 %v1338
        %1670 = vmatpush1.msra.mxu0 %v1337
        %1671 = vmatprep.subr.mxu0 %v1342
        %1672 = vmatpush1.msra.mxu0 %v1341
        %1673 = vmatprep.subr.mxu0 %v1346
        %1674 = vmatpush1.msra.mxu0 %v1345
        %1675 = vmatprep.subr.mxu0 %v1350
        %1676 = vmatpush1.msra.mxu0 %v1349
        %1677 = vmatprep.subr.mxu0 %v1354
        %1678 = vmatpush1.msra.mxu0 %v1353
        %1679 = vmatprep.subr.mxu0 %v1358
        %1680 = vmatpush1.msra.mxu0 %v1357
        %1681 = vmatprep.subr.mxu0 %v1362
        %1682 = vmatpush1.msra.mxu0 %v1361
        %1683 = vmatprep.subr.mxu0 %v1366
        %1684 = vmatpush1.msra.mxu0 %v1365
        %1685 = vmatprep.subr.mxu0 %v1370
        %1686 = vmatpush1.msra.mxu0 %v1369
        %1687 = vmatprep.subr.mxu0 %v1374
        %1688 = vmatpush1.msra.mxu0 %v1373
        %1689 = vmatprep.subr.mxu0 %v1378
        %1690 = vmatpush1.msra.mxu0 %v1377
        %1691 = vmatprep.subr.mxu0 %v1382
        %1692 = vmatpush1.msra.mxu0 %v1381
        %1693 = vmatprep.subr.mxu0 %v1386
        %1694 = vmatpush1.msra.mxu0 %v1385
        %1695 = vmatprep.subr.mxu0 %v1390
        %1696 = vmatpush1.msra.mxu0 %v1389
        %1697 = vmatprep.subr.mxu0 %v1394
        %1698 = vmatpush1.msra.mxu0 %v1393
        %1699 = vmatprep.subr.mxu0 %v1398
        %1700 = vmatpush1.msra.mxu0 %v1397
        %1701 = vmatprep.subr.mxu0 %v1402
        %1702 = vmatpush1.msra.mxu0 %v1401
        %1703 = vmatprep.mubr.f32.mxu0 %v1148
        %1704 = vmatmul.mubr.f32.gmra.mrb[0].mxu0 %v1147
        %v1705 = vpop.f32.mrb[0].mxu0
        %v1706 = vadd.f32 %v1635, %v1705
        %v1707 = vpop.f32.mrb[0].mxu0
        %v1708 = vadd.f32 %v1637, %v1707
        %1709 = vdwg.mxu0
        %1710 = vmatprep.subr.mxu0 %v1152
        %1711 = vmatpush1.msra.mxu0 %v1151
        %1712 = vmatprep.subr.mxu0 %v1156
        %1713 = vmatpush1.msra.mxu0 %v1155
        %1714 = vmatprep.subr.mxu0 %v1160
        %1715 = vmatpush1.msra.mxu0 %v1159
        %1716 = vmatprep.subr.mxu0 %v1164
        %1717 = vmatpush1.msra.mxu0 %v1163
        %1718 = vmatprep.subr.mxu0 %v1168
        %1719 = vmatpush1.msra.mxu0 %v1167
        %1720 = vmatprep.subr.mxu0 %v1172
        %1721 = vmatpush1.msra.mxu0 %v1171
        %1722 = vmatprep.subr.mxu0 %v1176
        %1723 = vmatpush1.msra.mxu0 %v1175
        %1724 = vmatprep.subr.mxu0 %v1180
        %1725 = vmatpush1.msra.mxu0 %v1179
        %1726 = vmatprep.subr.mxu0 %v1184
        %1727 = vmatpush1.msra.mxu0 %v1183
        %1728 = vmatprep.subr.mxu0 %v1188
        %1729 = vmatpush1.msra.mxu0 %v1187
        %1730 = vmatprep.subr.mxu0 %v1192
        %1731 = vmatpush1.msra.mxu0 %v1191
        %1732 = vmatprep.subr.mxu0 %v1196
        %1733 = vmatpush1.msra.mxu0 %v1195
        %1734 = vmatprep.subr.mxu0 %v1200
        %1735 = vmatpush1.msra.mxu0 %v1199
        %1736 = vmatprep.subr.mxu0 %v1204
        %1737 = vmatpush1.msra.mxu0 %v1203
        %1738 = vmatprep.subr.mxu0 %v1208
        %1739 = vmatpush1.msra.mxu0 %v1207
        %1740 = vmatprep.subr.mxu0 %v1212
        %1741 = vmatpush1.msra.mxu0 %v1211
        %1742 = vmatprep.subr.mxu0 %v1216
        %1743 = vmatpush1.msra.mxu0 %v1215
        %1744 = vmatprep.subr.mxu0 %v1220
        %1745 = vmatpush1.msra.mxu0 %v1219
        %1746 = vmatprep.subr.mxu0 %v1224
        %1747 = vmatpush1.msra.mxu0 %v1223
        %1748 = vmatprep.subr.mxu0 %v1228
        %1749 = vmatpush1.msra.mxu0 %v1227
        %1750 = vmatprep.subr.mxu0 %v1232
        %1751 = vmatpush1.msra.mxu0 %v1231
        %1752 = vmatprep.subr.mxu0 %v1236
        %1753 = vmatpush1.msra.mxu0 %v1235
        %1754 = vmatprep.subr.mxu0 %v1240
        %1755 = vmatpush1.msra.mxu0 %v1239
        %1756 = vmatprep.subr.mxu0 %v1244
        %1757 = vmatpush1.msra.mxu0 %v1243
        %1758 = vmatprep.subr.mxu0 %v1248
        %1759 = vmatpush1.msra.mxu0 %v1247
        %1760 = vmatprep.subr.mxu0 %v1252
        %1761 = vmatpush1.msra.mxu0 %v1251
        %1762 = vmatprep.subr.mxu0 %v1256
        %1763 = vmatpush1.msra.mxu0 %v1255
        %1764 = vmatprep.subr.mxu0 %v1260
        %1765 = vmatpush1.msra.mxu0 %v1259
        %1766 = vmatprep.subr.mxu0 %v1264
        %1767 = vmatpush1.msra.mxu0 %v1263
        %1768 = vmatprep.subr.mxu0 %v1268
        %1769 = vmatpush1.msra.mxu0 %v1267
        %1770 = vmatprep.subr.mxu0 %v1272
        %1771 = vmatpush1.msra.mxu0 %v1271
        %1772 = vmatprep.subr.mxu0 %v1276
        %1773 = vmatpush1.msra.mxu0 %v1275
        %1774 = vmatprep.mubr.f32.mxu0 %v1146
        %1775 = vmatmul.mubr.f32.gmra.mrb[0].mxu0 %v1145
        %v1776 = vpop.f32.mrb[0].mxu0
        %v1777 = vadd.f32 %v1564, %v1776
        %v1778 = vpop.f32.mrb[0].mxu0
        %v1779 = vadd.f32 %v1566, %v1778
        %1780 = vdwg.mxu0
        %1781 = vmatprep.subr.mxu0 %v1280
        %1782 = vmatpush1.msra.mxu0 %v1279
        %1783 = vmatprep.subr.mxu0 %v1284
        %1784 = vmatpush1.msra.mxu0 %v1283
        %1785 = vmatprep.subr.mxu0 %v1288
        %1786 = vmatpush1.msra.mxu0 %v1287
        %1787 = vmatprep.subr.mxu0 %v1292
        %1788 = vmatpush1.msra.mxu0 %v1291
        %1789 = vmatprep.subr.mxu0 %v1296
        %1790 = vmatpush1.msra.mxu0 %v1295
        %1791 = vmatprep.subr.mxu0 %v1300
        %1792 = vmatpush1.msra.mxu0 %v1299
        %1793 = vmatprep.subr.mxu0 %v1304
        %1794 = vmatpush1.msra.mxu0 %v1303
        %1795 = vmatprep.subr.mxu0 %v1308
        %1796 = vmatpush1.msra.mxu0 %v1307
        %1797 = vmatprep.subr.mxu0 %v1312
        %1798 = vmatpush1.msra.mxu0 %v1311
        %1799 = vmatprep.subr.mxu0 %v1316
        %1800 = vmatpush1.msra.mxu0 %v1315
        %1801 = vmatprep.subr.mxu0 %v1320
        %1802 = vmatpush1.msra.mxu0 %v1319
        %1803 = vmatprep.subr.mxu0 %v1324
        %1804 = vmatpush1.msra.mxu0 %v1323
        %1805 = vmatprep.subr.mxu0 %v1328
        %1806 = vmatpush1.msra.mxu0 %v1327
        %1807 = vmatprep.subr.mxu0 %v1332
        %1808 = vmatpush1.msra.mxu0 %v1331
        %1809 = vmatprep.subr.mxu0 %v1336
        %1810 = vmatpush1.msra.mxu0 %v1335
        %1811 = vmatprep.subr.mxu0 %v1340
        %1812 = vmatpush1.msra.mxu0 %v1339
        %1813 = vmatprep.subr.mxu0 %v1344
        %1814 = vmatpush1.msra.mxu0 %v1343
        %1815 = vmatprep.subr.mxu0 %v1348
        %1816 = vmatpush1.msra.mxu0 %v1347
        %1817 = vmatprep.subr.mxu0 %v1352
        %1818 = vmatpush1.msra.mxu0 %v1351
        %1819 = vmatprep.subr.mxu0 %v1356
        %1820 = vmatpush1.msra.mxu0 %v1355
        %1821 = vmatprep.subr.mxu0 %v1360
        %1822 = vmatpush1.msra.mxu0 %v1359
        %1823 = vmatprep.subr.mxu0 %v1364
        %1824 = vmatpush1.msra.mxu0 %v1363
        %1825 = vmatprep.subr.mxu0 %v1368
        %1826 = vmatpush1.msra.mxu0 %v1367
        %1827 = vmatprep.subr.mxu0 %v1372
        %1828 = vmatpush1.msra.mxu0 %v1371
        %1829 = vmatprep.subr.mxu0 %v1376
        %1830 = vmatpush1.msra.mxu0 %v1375
        %1831 = vmatprep.subr.mxu0 %v1380
        %1832 = vmatpush1.msra.mxu0 %v1379
        %1833 = vmatprep.subr.mxu0 %v1384
        %1834 = vmatpush1.msra.mxu0 %v1383
        %1835 = vmatprep.subr.mxu0 %v1388
        %1836 = vmatpush1.msra.mxu0 %v1387
        %1837 = vmatprep.subr.mxu0 %v1392
        %1838 = vmatpush1.msra.mxu0 %v1391
        %1839 = vmatprep.subr.mxu0 %v1396
        %1840 = vmatpush1.msra.mxu0 %v1395
        %1841 = vmatprep.subr.mxu0 %v1400
        %1842 = vmatpush1.msra.mxu0 %v1399
        %1843 = vmatprep.subr.mxu0 %v1404
        %1844 = vmatpush1.msra.mxu0 %v1403
        %1845 = vmatprep.mubr.f32.mxu0 %v1148
        %1846 = vmatmul.mubr.f32.gmra.mrb[0].mxu0 %v1147
        %v1847 = vpop.f32.mrb[0].mxu0
        %v1848 = vadd.f32 %v1777, %v1847
        %v1849 = vpop.f32.mrb[0].mxu0
        %v1850 = vadd.f32 %v1779, %v1849
        %1851 = vdwg.mxu0
        %1852 = vst [vmem:[%s375] sm:$0xff] %v1706
        %1853 = vst [vmem:[%s375 + $0x8] sm:$0xff] %v1708
        %1854 = vst [vmem:[%s375 + $0x10] sm:$0xff] %v1848
        %1855 = vst [vmem:[%s375 + $0x18] sm:$0xff] %v1850
        %s1856 = sand.u32 %s226, 1
        %s1857 = scalar_lea.sflag [#allocation4], %s1856
        %s1858 = sand.u32 %s226, 1
        %s1859 = smul.addr %s1858, 32
        %s1860 = scalar_lea.vmem [#allocation8], %s1859
        // Predicated region
        $region65: #{tpu_custom_call.1} parent=51 // pred_check
          %p1861 = pneg %p236
        $region66: #{tpu_custom_call.1} parent=51 // pred_check_branch
          %1863 = sbr.rel (%p1861) target = $region68
        $region67: #{tpu_custom_call.1} parent=51 // pred_region
          %s1865 = ssub.s32 512, 512
          %1866 = vsyncadd %s1857, %s1865
          %s1867 = smul.addr %s29, 4
          %s1868 = smul.addr %s28, 4
          %s1869 = sadd.s32 %s1867, %s1868
          %s1870 = smul.addr %s1869, 128
          %s1871 = scalar_lea.hbm %s8, %s1870
          %s1873 = sshll.u32 %s1860, 4
          %s1874 = int_to_ptr.vmem [resolvable:$true] %s1873
          %1876 = dma.vmem_to_hbm [thread:$0]  %s1874, 512, %s1871, %s1857
        $region68: #{tpu_custom_call.1} parent=51 // pred_fallthru
          _
      $region52: #{tpu_custom_call.1} parent=5 // pred_fallthru
        _
      %p1877 = scmp.le.s32.totalorder 2, %s19
      // Predicated region
      $region69: #{tpu_custom_call.1} parent=5 // pred_check
        %p1878 = pneg %p1877
      $region70: #{tpu_custom_call.1} parent=5 // pred_check_branch
        %1880 = sbr.rel (%p1878) target = $region72
      $region71: #{tpu_custom_call.1} parent=5 // pred_region
        %s1881 = ssub.s32 %s19, 2
        // Predicated region
        $region73: #{tpu_custom_call.1} parent=71 // pred_check
          %p1882 = pneg %p242
        $region74: #{tpu_custom_call.1} parent=71 // pred_check_branch
          %1884 = sbr.rel (%p1882) target = $region76
        $region75: #{tpu_custom_call.1} parent=71 // pred_region
          %s1885 = sand.u32 %s227, 1
          %s1886 = scalar_lea.sflag [#allocation4], %s1885
          %s1887 = sand.u32 %s227, 1
          %s1888 = smul.addr %s1887, 32
          %s1889 = scalar_lea.vmem [#allocation8], %s1888
          %1890 = dma.done %s1886, 512
        $region76: #{tpu_custom_call.1} parent=71 // pred_fallthru
          _
      $region72: #{tpu_custom_call.1} parent=5 // pred_fallthru
        _
    $region6: #{tpu_custom_call.1} parent=1 // loop_footer
      %s23 = sadd.s32 1, %s19
    $region7: #{tpu_custom_call.1} parent=1 // loop_footer_branch
      %18 = sbr.rel target = $region3
    $region8: #{tpu_custom_call.1} parent=1 // loop_exit
      _
    %1891 = vsyncpa [#allocation3], 1
    %s1892 = scalar_lea.sflag [#allocation3], 1
    %1893 = vsyncpa %s1892, 1
    %1894 = vsyncpa [#allocation6], 1
    %1895 = vsyncpa [#allocation4], 1
    %s1896 = scalar_lea.sflag [#allocation4], 1
    %1897 = vsyncpa %s1896, 1

</llo_original>
